<compile_context>
chip_gen: v5e
topology: v5e:2x2
jax: 0.10.0
libtpu: 0.0.40
codegen_flags: <defaults>
</compile_context>

<pallas_src>
import functools
import math

import jax
import jax.numpy as jnp
from jax import lax
from jax.experimental import pallas as pl
from jax.experimental.pallas import tpu as pltpu


_MASK_VALUE = -1e30  # large finite negative: avoids inf-inf NaNs in online softmax


def _pick_tile(dim, target, mult):
    """Largest tile <= target that is a multiple of `mult` and divides `dim`;
    falls back to the full dim (full-extent blocks are always legal)."""
    if dim <= target:
        return dim
    t = (min(target, dim) // mult) * mult
    while t >= mult:
        if dim % t == 0:
            return t
        t -= mult
    return dim


@functools.lru_cache(maxsize=None)
def _vmem_limit_bytes():
    # Per-generation scoped-VMEM budget: ~75% of physical VMEM, capped at 96 MiB.
    #   v5e / v6e : 128 MiB physical -> 96 MiB scoped (default is only 16/32 MiB)
    #   v7x       :  64 MiB physical -> 48 MiB scoped
    try:
        cap = int(pltpu.get_tpu_info().vmem_capacity_bytes)
    except Exception:
        cap = 64 * 1024 * 1024
    return min((cap * 3) // 4, 96 * 1024 * 1024)


# --------------------- fused QKV projection (W-resident) ----------------------

def _qkv_proj_kernel(x_ref, wq_ref, wk_ref, wv_ref, bq_ref, bk_ref, bv_ref,
                     q_ref, k_ref, v_ref, *, n_kv_head, head_dim):
    x = x_ref[...]                                                 # (tm, C) bf16
    q = jnp.dot(x, wq_ref[...], preferred_element_type=jnp.float32) + bq_ref[...]
    q_ref[...] = q.astype(q_ref.dtype)                             # (tm, C)
    k = jnp.dot(x, wk_ref[...], preferred_element_type=jnp.float32) + bk_ref[...]
    v = jnp.dot(x, wv_ref[...], preferred_element_type=jnp.float32) + bv_ref[...]
    # Write k/v directly in (n_kv_head, tm, D) layout -> attention kernel can put
    # the KV-head axis on the grid without any HBM transpose.
    for hk in range(n_kv_head):
        lo, hi = hk * head_dim, (hk + 1) * head_dim
        k_ref[hk, :, :] = k[:, lo:hi].astype(k_ref.dtype)
        v_ref[hk, :, :] = v[:, lo:hi].astype(v_ref.dtype)


def pallas_qkv_proj(x3, w_q, w_k, w_v, b_q, b_k, b_v, *, n_kv_head, head_dim,
                    tm_target=256):
    B, T, C = x3.shape
    kv_dim = n_kv_head * head_dim
    tm = _pick_tile(T, tm_target, 16)
    kernel = functools.partial(_qkv_proj_kernel,
                               n_kv_head=n_kv_head, head_dim=head_dim)
    out_shapes = (
        jax.ShapeDtypeStruct((B, T, C), jnp.bfloat16),                    # q
        jax.ShapeDtypeStruct((B, n_kv_head, T, head_dim), jnp.bfloat16),  # k
        jax.ShapeDtypeStruct((B, n_kv_head, T, head_dim), jnp.bfloat16),  # v
    )
    return pl.pallas_call(
        kernel,
        out_shape=out_shapes,
        grid=(B, T // tm),
        in_specs=[
            pl.BlockSpec((None, tm, C), lambda b, t: (b, t, 0)),     # x streamed
            pl.BlockSpec((C, C), lambda b, t: (0, 0)),               # w_q resident
            pl.BlockSpec((C, kv_dim), lambda b, t: (0, 0)),          # w_k resident
            pl.BlockSpec((C, kv_dim), lambda b, t: (0, 0)),          # w_v resident
            pl.BlockSpec((1, C), lambda b, t: (0, 0)),
            pl.BlockSpec((1, kv_dim), lambda b, t: (0, 0)),
            pl.BlockSpec((1, kv_dim), lambda b, t: (0, 0)),
        ],
        out_specs=(
            pl.BlockSpec((None, tm, C), lambda b, t: (b, t, 0)),
            pl.BlockSpec((None, n_kv_head, tm, head_dim), lambda b, t: (b, 0, t, 0)),
            pl.BlockSpec((None, n_kv_head, tm, head_dim), lambda b, t: (b, 0, t, 0)),
        ),
        compiler_params=pltpu.CompilerParams(
            dimension_semantics=("parallel", "parallel"),
            vmem_limit_bytes=_vmem_limit_bytes()),
    )(x3, w_q, w_k, w_v, b_q, b_k, b_v)


# ------------------------ output projection (W-resident) ----------------------

def _proj_kernel(x_ref, w_ref, b_ref, o_ref):
    o_ref[...] = (jnp.dot(x_ref[...], w_ref[...],
                          preferred_element_type=jnp.float32)
                  + b_ref[...]).astype(o_ref.dtype)


def pallas_proj(x3, w, b, *, out_dtype=jnp.float32, tm_target=256):
    B, T, Cin = x3.shape
    _, N = w.shape
    tm = _pick_tile(T, tm_target, 16)
    return pl.pallas_call(
        _proj_kernel,
        out_shape=jax.ShapeDtypeStruct((B, T, N), out_dtype),
        grid=(B, T // tm),
        in_specs=[
            pl.BlockSpec((None, tm, Cin), lambda b, t: (b, t, 0)),
            pl.BlockSpec((Cin, N), lambda b, t: (0, 0)),             # W resident
            pl.BlockSpec((1, N), lambda b, t: (0, 0)),
        ],
        out_specs=pl.BlockSpec((None, tm, N), lambda b, t: (b, t, 0)),
        compiler_params=pltpu.CompilerParams(
            dimension_semantics=("parallel", "parallel"),
            vmem_limit_bytes=_vmem_limit_bytes()),
    )(x3, w, b)


# ------------------- flash-style GQA causal attention kernel ------------------

def _flash_gqa_kernel(qi_tbl, ki_tbl, q_ref, k_ref, v_ref, o_ref,
                      qs_ref, m_ref, l_ref, acc_ref, *, n_group_head, scale):
    # grid = (B, n_kv_head, tri_steps); qi/ki come from the scalar-prefetched
    # lower-triangular step tables (only visible tiles are ever visited).
    step = pl.program_id(2)
    qi = qi_tbl[step]
    ki = ki_tbl[step]

    @pl.when(ki == 0)
    def _init():
        # Hoist the per-head slice + 1/sqrt(D) scale out of the KV loop: done once
        # per q tile (in f32, then cast) instead of once per (head, kv tile).
        for g in range(n_group_head):
            qs_ref[g] = (q_ref[:, g, :].astype(jnp.float32) * scale
                         ).astype(qs_ref.dtype)
        m_ref[...] = jnp.full(m_ref.shape, _MASK_VALUE, dtype=m_ref.dtype)
        l_ref[...] = jnp.zeros_like(l_ref)
        acc_ref[...] = jnp.zeros_like(acc_ref)

    def _update(visible):
        k = k_ref[...]                           # (tkv, D) bf16, one KV head
        v = v_ref[...]                           # (tkv, D) bf16
        for g in range(n_group_head):            # only the G heads sharing this KV head
            q = qs_ref[g]                        # (tq, D) bf16, pre-scaled
            s = lax.dot_general(q, k, (((1,), (1,)), ((), ())),
                                preferred_element_type=jnp.float32)   # (tq, tkv)
            if visible is not None:
                s = jnp.where(visible, s, _MASK_VALUE)
            m_prev = m_ref[g]                                         # (tq, 1)
            m_new = jnp.maximum(m_prev, jnp.max(s, axis=-1, keepdims=True))
            alpha = jnp.exp(m_prev - m_new)
            p = jnp.exp(s - m_new)
            l_ref[g] = alpha * l_ref[g] + jnp.sum(p, axis=-1, keepdims=True)
            acc_ref[g] = alpha * acc_ref[g] + lax.dot_general(
                p.astype(v.dtype), v, (((1,), (0,)), ((), ())),
                preferred_element_type=jnp.float32)                   # (tq, D)
            m_ref[g] = m_new

    # Tiles strictly below the diagonal: fully visible, no mask work at all.
    @pl.when(ki < qi)
    def _off_diag():
        _update(None)

    # Diagonal tile (tq == tkv): local triangular mask.
    @pl.when(ki == qi)
    def _diag():
        tq = qs_ref.shape[1]
        tkv = k_ref.shape[0]
        row = lax.broadcasted_iota(jnp.int32, (tq, tkv), 0)
        col = lax.broadcasted_iota(jnp.int32, (tq, tkv), 1)
        _update(col <= row)

    # The triangular step list visits ki in increasing order, so the diagonal tile is
    # the last visible KV tile for this q tile -> normalize and store there.
    @pl.when(ki == qi)
    def _finalize():
        for g in range(n_group_head):
            inv_l = pl.reciprocal(l_ref[g], approx=True)
            o_ref[:, g, :] = (acc_ref[g] * inv_l).astype(o_ref.dtype)


def pallas_flash_gqa_attention(q5, k, v):
    # q5: (B, T, n_kv_head, G, D)   k, v: (B, n_kv_head, T, D)   (no HBM transposes)
    B, T, n_kv_head, G, D = q5.shape
    tq_target = 512 if _vmem_limit_bytes() >= 80 * 1024 * 1024 else 256
    tq = _pick_tile(T, tq_target, 16)
    tkv = tq                     # equal tiles keep the causal mask local to the diag
    nq = T // tq
    scale = 1.0 / math.sqrt(D)

    # Flattened lower-triangular (qi, ki) step tables, scalar-prefetched to SMEM:
    # above-diagonal tiles are never visited (no grid-step overhead, no DMA).
    qi_list, ki_list = [], []
    for qi in range(nq):
        for ki in range(qi + 1):
            qi_list.append(qi)
            ki_list.append(ki)
    qi_tbl = jnp.asarray(qi_list, dtype=jnp.int32)
    ki_tbl = jnp.asarray(ki_list, dtype=jnp.int32)
    n_steps = len(qi_list)

    kernel = functools.partial(_flash_gqa_kernel, n_group_head=G, scale=scale)

    grid_spec = pltpu.PrefetchScalarGridSpec(
        num_scalar_prefetch=2,
        grid=(B, n_kv_head, n_steps),
        in_specs=[
            pl.BlockSpec((None, tq, None, G, D),
                         lambda b, hk, s, qt, kt: (b, qt[s], hk, 0, 0)),
            pl.BlockSpec((None, None, tkv, D),
                         lambda b, hk, s, qt, kt: (b, hk, kt[s], 0)),
            pl.BlockSpec((None, None, tkv, D),
                         lambda b, hk, s, qt, kt: (b, hk, kt[s], 0)),
        ],
        out_specs=pl.BlockSpec((None, tq, None, G, D),
                               lambda b, hk, s, qt, kt: (b, qt[s], hk, 0, 0)),
        scratch_shapes=[
            pltpu.VMEM((G, tq, D), jnp.bfloat16),   # pre-scaled q per group head
            pltpu.VMEM((G, tq, 1), jnp.float32),    # running max m
            pltpu.VMEM((G, tq, 1), jnp.float32),    # running denom l
            pltpu.VMEM((G, tq, D), jnp.float32),    # output accumulator
        ],
    )
    return pl.pallas_call(
        kernel,
        out_shape=jax.ShapeDtypeStruct((B, T, n_kv_head, G, D), q5.dtype),
        grid_spec=grid_spec,
        compiler_params=pltpu.CompilerParams(
            dimension_semantics=("parallel", "parallel", "arbitrary"),
            vmem_limit_bytes=_vmem_limit_bytes()),
    )(qi_tbl, ki_tbl, q5, k, v)


# ------------------------------ module wrapper --------------------------------

def prepare_params(w_attn, b_attn, w_proj, b_proj, n_embd, n_group_head):
    """One-time (outside the per-call path) bf16 cast + split of the fused c_attn
    weight; biases stay f32 and are added after the f32 accumulation."""
    C = n_embd
    kv_dim = C // n_group_head
    w_q = w_attn[:, :C].astype(jnp.bfloat16)
    w_k = w_attn[:, C:C + kv_dim].astype(jnp.bfloat16)
    w_v = w_attn[:, C + kv_dim:].astype(jnp.bfloat16)
    b_q = b_attn[:C].reshape(1, C).astype(jnp.float32)
    b_k = b_attn[C:C + kv_dim].reshape(1, kv_dim).astype(jnp.float32)
    b_v = b_attn[C + kv_dim:].reshape(1, kv_dim).astype(jnp.float32)
    return (w_q, w_k, w_v, b_q, b_k, b_v,
            w_proj.astype(jnp.bfloat16), b_proj.reshape(1, C).astype(jnp.float32))


def causal_self_attention(x, params, n_head, n_group_head):
    B, T, C = x.shape
    head_dim = C // n_head
    n_kv_head = n_head // n_group_head
    w_q, w_k, w_v, b_q, b_k, b_v, w_proj, b_proj = params

    x3 = x.astype(jnp.bfloat16)                                   # (B, T, C)
    q, k, v = pallas_qkv_proj(x3, w_q, w_k, w_v, b_q, b_k, b_v,
                              n_kv_head=n_kv_head, head_dim=head_dim)
    # q: (B, T, C) -> (B, T, n_kv_head, G, D) is a free reshape; k/v already come
    # out of the projection kernel in (B, n_kv_head, T, D) layout.
    q5 = q.reshape(B, T, n_kv_head, n_group_head, head_dim)
    y5 = pallas_flash_gqa_attention(q5, k, v)                     # (B,T,n_kv,G,D) bf16
    y3 = y5.reshape(B, T, C)                                      # free reshape
    return pallas_proj(y3, w_proj, b_proj)                        # (B, T, C) f32


# -------------------------------- reference ------------------------------------

def reference(x, raw_params, n_head, n_group_head):
    B, T, C = x.shape
    head_dim = C // n_head
    n_kv_head = n_head // n_group_head
    kv_dim = C // n_group_head
    w_attn, b_attn, w_proj, b_proj = raw_params

    qkv = x @ w_attn + b_attn
    q = qkv[..., :C].reshape(B, T, n_head, head_dim).transpose(0, 2, 1, 3)
    k = qkv[..., C:C + kv_dim].reshape(B, T, n_kv_head, head_dim).transpose(0, 2, 1, 3)
    v = qkv[..., C + kv_dim:].reshape(B, T, n_kv_head, head_dim).transpose(0, 2, 1, 3)
    k = jnp.repeat(k, n_group_head, axis=1)
    v = jnp.repeat(v, n_group_head, axis=1)
    s = jnp.einsum("bhqd,bhkd->bhqk", q, k) / math.sqrt(head_dim)
    mask = jnp.tril(jnp.ones((T, T), dtype=bool))
    s = jnp.where(mask, s, -jnp.inf)
    p = jax.nn.softmax(s, axis=-1)
    y = jnp.einsum("bhqk,bhkd->bhqd", p, v)
    y = y.transpose(0, 2, 1, 3).reshape(B, T, C)
    return y @ w_proj + b_proj


# ---------------------------------- main ----------------------------------------

if __name__ == "__main__":
    # config: n_embd=32, n_head=4, n_group_head=2, block_size=16
    B, T, C = 2, 8, 32
    n_head = 4
    n_group_head = 2
    ratio_out = C + 2 * (C // n_group_head)   # int((1 + 2/n_group_head) * n_embd) = 64

    key = jax.random.PRNGKey(0)
    kx, k1, k2, k3, k4 = jax.random.split(key, 5)

    x = jax.random.normal(kx, (B, T, C), dtype=jnp.float32)

    s_attn = 1.0 / math.sqrt(C)
    w_attn = jax.random.uniform(k1, (C, ratio_out), minval=-s_attn, maxval=s_attn,
                                dtype=jnp.float32)
    b_attn = jax.random.uniform(k2, (ratio_out,), minval=-s_attn, maxval=s_attn,
                                dtype=jnp.float32)
    w_proj = jax.random.uniform(k3, (C, C), minval=-s_attn, maxval=s_attn,
                                dtype=jnp.float32)
    b_proj = jax.random.uniform(k4, (C,), minval=-s_attn, maxval=s_attn,
                                dtype=jnp.float32)

    params = prepare_params(w_attn, b_attn, w_proj, b_proj, C, n_group_head)

    fwd = jax.jit(functools.partial(causal_self_attention,
                                    n_head=n_head, n_group_head=n_group_head))
    out = jax.block_until_ready(fwd(x, params))

    ref = reference(x, (w_attn, b_attn, w_proj, b_proj), n_head, n_group_head)
    assert out.shape == (B, T, C)
    # bf16 matmul operands / intermediates -> looser tolerance vs the f32 reference.
    assert jnp.allclose(out, ref, atol=5e-2, rtol=5e-2), "mismatch vs pure-JAX reference"

    print("KERNEL_OK")
</pallas_src>

<mosaic_0001>
module attributes {stable_mosaic.version = 11 : i64} {
  func.func @_qkv_proj_kernel(%arg0: i32, %arg1: i32, %arg2: memref<1x8x32xbf16, #tpu.memory_space<vmem>>, %arg3: memref<32x32xbf16, #tpu.memory_space<vmem>>, %arg4: memref<32x16xbf16, #tpu.memory_space<vmem>>, %arg5: memref<32x16xbf16, #tpu.memory_space<vmem>>, %arg6: memref<1x32xf32, #tpu.memory_space<vmem>>, %arg7: memref<1x16xf32, #tpu.memory_space<vmem>>, %arg8: memref<1x16xf32, #tpu.memory_space<vmem>>, %arg9: memref<1x8x32xbf16, #tpu.memory_space<vmem>>, %arg10: memref<1x2x8x8xbf16, #tpu.memory_space<vmem>>, %arg11: memref<1x2x8x8xbf16, #tpu.memory_space<vmem>>) attributes {dimension_semantics = [#tpu.dimension_semantics<parallel>, #tpu.dimension_semantics<parallel>], iteration_bounds = array<i64: 2, 1>, scalar_prefetch = 0 : i64, scratch_operands = 0 : i64, tpu.core_type = #tpu.core_type<tc>, window_params = [{transform_indices = @transform_0, window_bounds = array<i64: 1, 8, 32>}, {pipeline_mode = #tpu.pipeline_mode<synchronous>, transform_indices = @transform_1, window_bounds = array<i64: 32, 32>}, {pipeline_mode = #tpu.pipeline_mode<synchronous>, transform_indices = @transform_2, window_bounds = array<i64: 32, 16>}, {pipeline_mode = #tpu.pipeline_mode<synchronous>, transform_indices = @transform_3, window_bounds = array<i64: 32, 16>}, {pipeline_mode = #tpu.pipeline_mode<synchronous>, transform_indices = @transform_4, window_bounds = array<i64: 1, 32>}, {pipeline_mode = #tpu.pipeline_mode<synchronous>, transform_indices = @transform_5, window_bounds = array<i64: 1, 16>}, {pipeline_mode = #tpu.pipeline_mode<synchronous>, transform_indices = @transform_6, window_bounds = array<i64: 1, 16>}, {transform_indices = @transform_7, window_bounds = array<i64: 1, 8, 32>}, {transform_indices = @transform_8, window_bounds = array<i64: 1, 2, 8, 8>}, {transform_indices = @transform_9, window_bounds = array<i64: 1, 2, 8, 8>}]} {
    %c0 = arith.constant 0 : index
    %c0_0 = arith.constant 0 : index
    %c0_1 = arith.constant 0 : index
    %0 = vector.load %arg2[%c0, %c0_0, %c0_1] : memref<1x8x32xbf16, #tpu.memory_space<vmem>>, vector<1x8x32xbf16>
    %1 = vector.shape_cast %0 : vector<1x8x32xbf16> to vector<8x32xbf16>
    %c0_2 = arith.constant 0 : index
    %c0_3 = arith.constant 0 : index
    %2 = vector.load %arg3[%c0_2, %c0_3] : memref<32x32xbf16, #tpu.memory_space<vmem>>, vector<32x32xbf16>
    %cst = arith.constant dense<0.000000e+00> : vector<8x32xf32>
    %3 = tpu.matmul %1, %2, %cst {dimension_numbers = #tpu.dot_dimension_numbers<[1], [0], [0], [1], [0, 0, 1, 1], [], []>} : vector<8x32xbf16>, vector<32x32xbf16>, vector<8x32xf32> -> vector<8x32xf32>
    %c0_4 = arith.constant 0 : index
    %c0_5 = arith.constant 0 : index
    %4 = vector.load %arg6[%c0_4, %c0_5] : memref<1x32xf32, #tpu.memory_space<vmem>>, vector<1x32xf32>
    %5 = vector.broadcast %4 : vector<1x32xf32> to vector<8x32xf32>
    %6 = arith.addf %3, %5 : vector<8x32xf32>
    %7 = arith.truncf %6 : vector<8x32xf32> to vector<8x32xbf16>
    %c0_6 = arith.constant 0 : index
    %c0_7 = arith.constant 0 : index
    %c0_8 = arith.constant 0 : index
    %8 = vector.load %arg9[%c0_6, %c0_7, %c0_8] : memref<1x8x32xbf16, #tpu.memory_space<vmem>>, vector<1x8x32xbf16>
    %9 = vector.shape_cast %8 : vector<1x8x32xbf16> to vector<8x32xbf16>
    %10 = vector.shape_cast %7 : vector<8x32xbf16> to vector<1x8x32xbf16>
    tpu.vector_store %arg9[%c0_6, %c0_7, %c0_8], %10 {strides = array<i32>} : memref<1x8x32xbf16, #tpu.memory_space<vmem>>, vector<1x8x32xbf16>,
    %c0_9 = arith.constant 0 : index
    %c0_10 = arith.constant 0 : index
    %11 = vector.load %arg4[%c0_9, %c0_10] : memref<32x16xbf16, #tpu.memory_space<vmem>>, vector<32x16xbf16>
    %cst_11 = arith.constant dense<0.000000e+00> : vector<8x16xf32>
    %12 = tpu.matmul %1, %11, %cst_11 {dimension_numbers = #tpu.dot_dimension_numbers<[1], [0], [0], [1], [0, 0, 1, 1], [], []>} : vector<8x32xbf16>, vector<32x16xbf16>, vector<8x16xf32> -> vector<8x16xf32>
    %c0_12 = arith.constant 0 : index
    %c0_13 = arith.constant 0 : index
    %13 = vector.load %arg7[%c0_12, %c0_13] : memref<1x16xf32, #tpu.memory_space<vmem>>, vector<1x16xf32>
    %14 = vector.broadcast %13 : vector<1x16xf32> to vector<8x16xf32>
    %15 = arith.addf %12, %14 : vector<8x16xf32>
    %c0_14 = arith.constant 0 : index
    %c0_15 = arith.constant 0 : index
    %16 = vector.load %arg5[%c0_14, %c0_15] : memref<32x16xbf16, #tpu.memory_space<vmem>>, vector<32x16xbf16>
    %cst_16 = arith.constant dense<0.000000e+00> : vector<8x16xf32>
    %17 = tpu.matmul %1, %16, %cst_16 {dimension_numbers = #tpu.dot_dimension_numbers<[1], [0], [0], [1], [0, 0, 1, 1], [], []>} : vector<8x32xbf16>, vector<32x16xbf16>, vector<8x16xf32> -> vector<8x16xf32>
    %c0_17 = arith.constant 0 : index
    %c0_18 = arith.constant 0 : index
    %18 = vector.load %arg8[%c0_17, %c0_18] : memref<1x16xf32, #tpu.memory_space<vmem>>, vector<1x16xf32>
    %19 = vector.broadcast %18 : vector<1x16xf32> to vector<8x16xf32>
    %20 = arith.addf %17, %19 : vector<8x16xf32>
    %21 = vector.extract_strided_slice %15 {offsets = [0, 0], sizes = [8, 8], strides = [1, 1]} : vector<8x16xf32> to vector<8x8xf32>
    %22 = arith.truncf %21 : vector<8x8xf32> to vector<8x8xbf16>
    %c0_19 = arith.constant 0 : index
    %c0_20 = arith.constant 0 : index
    %c0_21 = arith.constant 0 : index
    %c0_22 = arith.constant 0 : index
    %23 = vector.load %arg10[%c0_19, %c0_20, %c0_21, %c0_22] : memref<1x2x8x8xbf16, #tpu.memory_space<vmem>>, vector<1x1x8x8xbf16>
    %24 = vector.shape_cast %23 : vector<1x1x8x8xbf16> to vector<8x8xbf16>
    %25 = vector.shape_cast %22 : vector<8x8xbf16> to vector<1x1x8x8xbf16>
    tpu.vector_store %arg10[%c0_19, %c0_20, %c0_21, %c0_22], %25 {strides = array<i32>} : memref<1x2x8x8xbf16, #tpu.memory_space<vmem>>, vector<1x1x8x8xbf16>,
    %26 = vector.extract_strided_slice %20 {offsets = [0, 0], sizes = [8, 8], strides = [1, 1]} : vector<8x16xf32> to vector<8x8xf32>
    %27 = arith.truncf %26 : vector<8x8xf32> to vector<8x8xbf16>
    %c0_23 = arith.constant 0 : index
    %c0_24 = arith.constant 0 : index
    %c0_25 = arith.constant 0 : index
    %c0_26 = arith.constant 0 : index
    %28 = vector.load %arg11[%c0_23, %c0_24, %c0_25, %c0_26] : memref<1x2x8x8xbf16, #tpu.memory_space<vmem>>, vector<1x1x8x8xbf16>
    %29 = vector.shape_cast %28 : vector<1x1x8x8xbf16> to vector<8x8xbf16>
    %30 = vector.shape_cast %27 : vector<8x8xbf16> to vector<1x1x8x8xbf16>
    tpu.vector_store %arg11[%c0_23, %c0_24, %c0_25, %c0_26], %30 {strides = array<i32>} : memref<1x2x8x8xbf16, #tpu.memory_space<vmem>>, vector<1x1x8x8xbf16>,
    %31 = vector.extract_strided_slice %15 {offsets = [0, 8], sizes = [8, 8], strides = [1, 1]} : vector<8x16xf32> to vector<8x8xf32>
    %32 = arith.truncf %31 : vector<8x8xf32> to vector<8x8xbf16>
    %c0_27 = arith.constant 0 : index
    %c1 = arith.constant 1 : index
    %c0_28 = arith.constant 0 : index
    %c0_29 = arith.constant 0 : index
    %33 = vector.load %arg10[%c0_27, %c1, %c0_28, %c0_29] : memref<1x2x8x8xbf16, #tpu.memory_space<vmem>>, vector<1x1x8x8xbf16>
    %34 = vector.shape_cast %33 : vector<1x1x8x8xbf16> to vector<8x8xbf16>
    %35 = vector.shape_cast %32 : vector<8x8xbf16> to vector<1x1x8x8xbf16>
    tpu.vector_store %arg10[%c0_27, %c1, %c0_28, %c0_29], %35 {strides = array<i32>} : memref<1x2x8x8xbf16, #tpu.memory_space<vmem>>, vector<1x1x8x8xbf16>,
    %36 = vector.extract_strided_slice %20 {offsets = [0, 8], sizes = [8, 8], strides = [1, 1]} : vector<8x16xf32> to vector<8x8xf32>
    %37 = arith.truncf %36 : vector<8x8xf32> to vector<8x8xbf16>
    %c0_30 = arith.constant 0 : index
    %c1_31 = arith.constant 1 : index
    %c0_32 = arith.constant 0 : index
    %c0_33 = arith.constant 0 : index
    %38 = vector.load %arg11[%c0_30, %c1_31, %c0_32, %c0_33] : memref<1x2x8x8xbf16, #tpu.memory_space<vmem>>, vector<1x1x8x8xbf16>
    %39 = vector.shape_cast %38 : vector<1x1x8x8xbf16> to vector<8x8xbf16>
    %40 = vector.shape_cast %37 : vector<8x8xbf16> to vector<1x1x8x8xbf16>
    tpu.vector_store %arg11[%c0_30, %c1_31, %c0_32, %c0_33], %40 {strides = array<i32>} : memref<1x2x8x8xbf16, #tpu.memory_space<vmem>>, vector<1x1x8x8xbf16>,
    return
  }
  func.func @transform_0(%arg0: i32, %arg1: i32) -> (i32, i32, i32) {
    %c0_i32 = arith.constant 0 : i32
    %c0_i32_0 = arith.constant 0 : i32
    return %arg0, %arg1, %c0_i32 : i32, i32, i32
  }
  func.func @transform_1(%arg0: i32, %arg1: i32) -> (i32, i32) {
    %c0_i32 = arith.constant 0 : i32
    %c0_i32_0 = arith.constant 0 : i32
    %c0_i32_1 = arith.constant 0 : i32
    return %c0_i32, %c0_i32_0 : i32, i32
  }
  func.func @transform_2(%arg0: i32, %arg1: i32) -> (i32, i32) {
    %c0_i32 = arith.constant 0 : i32
    %c0_i32_0 = arith.constant 0 : i32
    %c0_i32_1 = arith.constant 0 : i32
    return %c0_i32, %c0_i32_0 : i32, i32
  }
  func.func @transform_3(%arg0: i32, %arg1: i32) -> (i32, i32) {
    %c0_i32 = arith.constant 0 : i32
    %c0_i32_0 = arith.constant 0 : i32
    %c0_i32_1 = arith.constant 0 : i32
    return %c0_i32, %c0_i32_0 : i32, i32
  }
  func.func @transform_4(%arg0: i32, %arg1: i32) -> (i32, i32) {
    %c0_i32 = arith.constant 0 : i32
    %c0_i32_0 = arith.constant 0 : i32
    %c0_i32_1 = arith.constant 0 : i32
    return %c0_i32, %c0_i32_0 : i32, i32
  }
  func.func @transform_5(%arg0: i32, %arg1: i32) -> (i32, i32) {
    %c0_i32 = arith.constant 0 : i32
    %c0_i32_0 = arith.constant 0 : i32
    %c0_i32_1 = arith.constant 0 : i32
    return %c0_i32, %c0_i32_0 : i32, i32
  }
  func.func @transform_6(%arg0: i32, %arg1: i32) -> (i32, i32) {
    %c0_i32 = arith.constant 0 : i32
    %c0_i32_0 = arith.constant 0 : i32
    %c0_i32_1 = arith.constant 0 : i32
    return %c0_i32, %c0_i32_0 : i32, i32
  }
  func.func @transform_7(%arg0: i32, %arg1: i32) -> (i32, i32, i32) {
    %c0_i32 = arith.constant 0 : i32
    %c0_i32_0 = arith.constant 0 : i32
    return %arg0, %arg1, %c0_i32 : i32, i32, i32
  }
  func.func @transform_8(%arg0: i32, %arg1: i32) -> (i32, i32, i32, i32) {
    %c0_i32 = arith.constant 0 : i32
    %c0_i32_0 = arith.constant 0 : i32
    %c0_i32_1 = arith.constant 0 : i32
    return %arg0, %c0_i32, %arg1, %c0_i32_0 : i32, i32, i32, i32
  }
  func.func @transform_9(%arg0: i32, %arg1: i32) -> (i32, i32, i32, i32) {
    %c0_i32 = arith.constant 0 : i32
    %c0_i32_0 = arith.constant 0 : i32
    %c0_i32_1 = arith.constant 0 : i32
    return %arg0, %c0_i32, %arg1, %c0_i32_0 : i32, i32, i32, i32
  }
}

module attributes {stable_mosaic.version = 11 : i64} {
  func.func @_proj_kernel(%arg0: i32, %arg1: i32, %arg2: memref<1x8x32xbf16, #tpu.memory_space<vmem>>, %arg3: memref<32x32xbf16, #tpu.memory_space<vmem>>, %arg4: memref<1x32xf32, #tpu.memory_space<vmem>>, %arg5: memref<1x8x32xf32, #tpu.memory_space<vmem>>) attributes {dimension_semantics = [#tpu.dimension_semantics<parallel>, #tpu.dimension_semantics<parallel>], iteration_bounds = array<i64: 2, 1>, scalar_prefetch = 0 : i64, scratch_operands = 0 : i64, tpu.core_type = #tpu.core_type<tc>, window_params = [{transform_indices = @transform_0, window_bounds = array<i64: 1, 8, 32>}, {pipeline_mode = #tpu.pipeline_mode<synchronous>, transform_indices = @transform_1, window_bounds = array<i64: 32, 32>}, {pipeline_mode = #tpu.pipeline_mode<synchronous>, transform_indices = @transform_2, window_bounds = array<i64: 1, 32>}, {transform_indices = @transform_3, window_bounds = array<i64: 1, 8, 32>}]} {
    %c0 = arith.constant 0 : index
    %c0_0 = arith.constant 0 : index
    %c0_1 = arith.constant 0 : index
    %0 = vector.load %arg2[%c0, %c0_0, %c0_1] : memref<1x8x32xbf16, #tpu.memory_space<vmem>>, vector<1x8x32xbf16>
    %1 = vector.shape_cast %0 : vector<1x8x32xbf16> to vector<8x32xbf16>
    %c0_2 = arith.constant 0 : index
    %c0_3 = arith.constant 0 : index
    %2 = vector.load %arg3[%c0_2, %c0_3] : memref<32x32xbf16, #tpu.memory_space<vmem>>, vector<32x32xbf16>
    %cst = arith.constant dense<0.000000e+00> : vector<8x32xf32>
    %3 = tpu.matmul %1, %2, %cst {dimension_numbers = #tpu.dot_dimension_numbers<[1], [0], [0], [1], [0, 0, 1, 1], [], []>} : vector<8x32xbf16>, vector<32x32xbf16>, vector<8x32xf32> -> vector<8x32xf32>
    %c0_4 = arith.constant 0 : index
    %c0_5 = arith.constant 0 : index
    %4 = vector.load %arg4[%c0_4, %c0_5] : memref<1x32xf32, #tpu.memory_space<vmem>>, vector<1x32xf32>
    %5 = vector.broadcast %4 : vector<1x32xf32> to vector<8x32xf32>
    %6 = arith.addf %3, %5 : vector<8x32xf32>
    %c0_6 = arith.constant 0 : index
    %c0_7 = arith.constant 0 : index
    %c0_8 = arith.constant 0 : index
    %7 = vector.load %arg5[%c0_6, %c0_7, %c0_8] : memref<1x8x32xf32, #tpu.memory_space<vmem>>, vector<1x8x32xf32>
    %8 = vector.shape_cast %7 : vector<1x8x32xf32> to vector<8x32xf32>
    %9 = vector.shape_cast %6 : vector<8x32xf32> to vector<1x8x32xf32>
    tpu.vector_store %arg5[%c0_6, %c0_7, %c0_8], %9 {strides = array<i32>} : memref<1x8x32xf32, #tpu.memory_space<vmem>>, vector<1x8x32xf32>,
    return
  }
  func.func @transform_0(%arg0: i32, %arg1: i32) -> (i32, i32, i32) {
    %c0_i32 = arith.constant 0 : i32
    %c0_i32_0 = arith.constant 0 : i32
    return %arg0, %arg1, %c0_i32 : i32, i32, i32
  }
  func.func @transform_1(%arg0: i32, %arg1: i32) -> (i32, i32) {
    %c0_i32 = arith.constant 0 : i32
    %c0_i32_0 = arith.constant 0 : i32
    %c0_i32_1 = arith.constant 0 : i32
    return %c0_i32, %c0_i32_0 : i32, i32
  }
  func.func @transform_2(%arg0: i32, %arg1: i32) -> (i32, i32) {
    %c0_i32 = arith.constant 0 : i32
    %c0_i32_0 = arith.constant 0 : i32
    %c0_i32_1 = arith.constant 0 : i32
    return %c0_i32, %c0_i32_0 : i32, i32
  }
  func.func @transform_3(%arg0: i32, %arg1: i32) -> (i32, i32, i32) {
    %c0_i32 = arith.constant 0 : i32
    %c0_i32_0 = arith.constant 0 : i32
    return %arg0, %arg1, %c0_i32 : i32, i32, i32
  }
}

module attributes {stable_mosaic.version = 11 : i64} {
  func.func @_flash_gqa_kernel(%arg0: i32, %arg1: i32, %arg2: i32, %arg3: memref<1xi32, #tpu.memory_space<smem>>, %arg4: memref<1xi32, #tpu.memory_space<smem>>, %arg5: memref<1x8x1x2x8xbf16, #tpu.memory_space<vmem>>, %arg6: memref<1x1x8x8xbf16, #tpu.memory_space<vmem>>, %arg7: memref<1x1x8x8xbf16, #tpu.memory_space<vmem>>, %arg8: memref<1x8x1x2x8xbf16, #tpu.memory_space<vmem>>, %arg9: memref<2x8x8xbf16, #tpu.memory_space<vmem>>, %arg10: memref<2x8x1xf32, #tpu.memory_space<vmem>>, %arg11: memref<2x8x1xf32, #tpu.memory_space<vmem>>, %arg12: memref<2x8x8xf32, #tpu.memory_space<vmem>>) attributes {dimension_semantics = [#tpu.dimension_semantics<parallel>, #tpu.dimension_semantics<parallel>, #tpu.dimension_semantics<arbitrary>], iteration_bounds = array<i64: 2, 2, 1>, scalar_prefetch = 2 : i64, scratch_operands = 4 : i64, tpu.core_type = #tpu.core_type<tc>, window_params = [{transform_indices = @transform_0, window_bounds = array<i64: 1, 8, 1, 2, 8>}, {transform_indices = @transform_1, window_bounds = array<i64: 1, 1, 8, 8>}, {transform_indices = @transform_2, window_bounds = array<i64: 1, 1, 8, 8>}, {transform_indices = @transform_3, window_bounds = array<i64: 1, 8, 1, 2, 8>}]} {
    %0 = arith.index_cast %arg2 : i32 to index
    %1 = memref.load %arg3[%0] : memref<1xi32, #tpu.memory_space<smem>>
    %2 = arith.index_cast %arg2 : i32 to index
    %3 = memref.load %arg4[%2] : memref<1xi32, #tpu.memory_space<smem>>
    %c0_i32 = arith.constant 0 : i32
    %4 = arith.cmpi eq, %3, %c0_i32 : i32
    %5 = arith.extui %4 : i1 to i32
    %c0_i32_0 = arith.constant 0 : i32
    %6 = arith.cmpi ne, %5, %c0_i32_0 : i32
    scf.if %6 {
      %c0 = arith.constant 0 : index
      %c0_4 = arith.constant 0 : index
      %c0_5 = arith.constant 0 : index
      %c0_6 = arith.constant 0 : index
      %c0_7 = arith.constant 0 : index
      %16 = vector.load %arg5[%c0, %c0_4, %c0_5, %c0_6, %c0_7] : memref<1x8x1x2x8xbf16, #tpu.memory_space<vmem>>, vector<1x8x1x1x8xbf16>
      %17 = vector.shape_cast %16 : vector<1x8x1x1x8xbf16> to vector<8x8xbf16>
      %18 = arith.extf %17 : vector<8x8xbf16> to vector<8x8xf32>
      %cst = arith.constant 0.353553385 : f32
      %19 = vector.broadcast %cst : f32 to vector<8x8xf32>
      %20 = arith.mulf %18, %19 : vector<8x8xf32>
      %21 = arith.truncf %20 : vector<8x8xf32> to vector<8x8xbf16>
      %c0_8 = arith.constant 0 : index
      %c0_9 = arith.constant 0 : index
      %c0_10 = arith.constant 0 : index
      %22 = vector.load %arg9[%c0_8, %c0_9, %c0_10] : memref<2x8x8xbf16, #tpu.memory_space<vmem>>, vector<1x8x8xbf16>
      %23 = vector.shape_cast %22 : vector<1x8x8xbf16> to vector<8x8xbf16>
      %24 = vector.shape_cast %21 : vector<8x8xbf16> to vector<1x8x8xbf16>
      tpu.vector_store %arg9[%c0_8, %c0_9, %c0_10], %24 {strides = array<i32>} : memref<2x8x8xbf16, #tpu.memory_space<vmem>>, vector<1x8x8xbf16>,
      %c0_11 = arith.constant 0 : index
      %c0_12 = arith.constant 0 : index
      %c0_13 = arith.constant 0 : index
      %c1 = arith.constant 1 : index
      %c0_14 = arith.constant 0 : index
      %25 = vector.load %arg5[%c0_11, %c0_12, %c0_13, %c1, %c0_14] : memref<1x8x1x2x8xbf16, #tpu.memory_space<vmem>>, vector<1x8x1x1x8xbf16>
      %26 = vector.shape_cast %25 : vector<1x8x1x1x8xbf16> to vector<8x8xbf16>
      %27 = arith.extf %26 : vector<8x8xbf16> to vector<8x8xf32>
      %cst_15 = arith.constant 0.353553385 : f32
      %28 = vector.broadcast %cst_15 : f32 to vector<8x8xf32>
      %29 = arith.mulf %27, %28 : vector<8x8xf32>
      %30 = arith.truncf %29 : vector<8x8xf32> to vector<8x8xbf16>
      %c1_16 = arith.constant 1 : index
      %c0_17 = arith.constant 0 : index
      %c0_18 = arith.constant 0 : index
      %31 = vector.load %arg9[%c1_16, %c0_17, %c0_18] : memref<2x8x8xbf16, #tpu.memory_space<vmem>>, vector<1x8x8xbf16>
      %32 = vector.shape_cast %31 : vector<1x8x8xbf16> to vector<8x8xbf16>
      %33 = vector.shape_cast %30 : vector<8x8xbf16> to vector<1x8x8xbf16>
      tpu.vector_store %arg9[%c1_16, %c0_17, %c0_18], %33 {strides = array<i32>} : memref<2x8x8xbf16, #tpu.memory_space<vmem>>, vector<1x8x8xbf16>,
      %cst_19 = arith.constant -1.000000e+30 : f32
      %34 = vector.broadcast %cst_19 : f32 to vector<2x8x1xf32>
      %c0_20 = arith.constant 0 : index
      %c0_21 = arith.constant 0 : index
      %c0_22 = arith.constant 0 : index
      %35 = vector.load %arg10[%c0_20, %c0_21, %c0_22] : memref<2x8x1xf32, #tpu.memory_space<vmem>>, vector<2x8x1xf32>
      tpu.vector_store %arg10[%c0_20, %c0_21, %c0_22], %34 {strides = array<i32>} : memref<2x8x1xf32, #tpu.memory_space<vmem>>, vector<2x8x1xf32>,
      %cst_23 = arith.constant 0.000000e+00 : f32
      %36 = vector.broadcast %cst_23 : f32 to vector<2x8x1xf32>
      %c0_24 = arith.constant 0 : index
      %c0_25 = arith.constant 0 : index
      %c0_26 = arith.constant 0 : index
      %37 = vector.load %arg11[%c0_24, %c0_25, %c0_26] : memref<2x8x1xf32, #tpu.memory_space<vmem>>, vector<2x8x1xf32>
      tpu.vector_store %arg11[%c0_24, %c0_25, %c0_26], %36 {strides = array<i32>} : memref<2x8x1xf32, #tpu.memory_space<vmem>>, vector<2x8x1xf32>,
      %cst_27 = arith.constant 0.000000e+00 : f32
      %38 = vector.broadcast %cst_27 : f32 to vector<2x8x8xf32>
      %c0_28 = arith.constant 0 : index
      %c0_29 = arith.constant 0 : index
      %c0_30 = arith.constant 0 : index
      %39 = vector.load %arg12[%c0_28, %c0_29, %c0_30] : memref<2x8x8xf32, #tpu.memory_space<vmem>>, vector<2x8x8xf32>
      tpu.vector_store %arg12[%c0_28, %c0_29, %c0_30], %38 {strides = array<i32>} : memref<2x8x8xf32, #tpu.memory_space<vmem>>, vector<2x8x8xf32>,
    } else {
    }
    %7 = arith.cmpi slt, %3, %1 : i32
    %8 = arith.extui %7 : i1 to i32
    %c0_i32_1 = arith.constant 0 : i32
    %9 = arith.cmpi ne, %8, %c0_i32_1 : i32
    scf.if %9 {
      %c0 = arith.constant 0 : index
      %c0_4 = arith.constant 0 : index
      %c0_5 = arith.constant 0 : index
      %c0_6 = arith.constant 0 : index
      %16 = vector.load %arg6[%c0, %c0_4, %c0_5, %c0_6] : memref<1x1x8x8xbf16, #tpu.memory_space<vmem>>, vector<1x1x8x8xbf16>
      %17 = vector.shape_cast %16 : vector<1x1x8x8xbf16> to vector<8x8xbf16>
      %c0_7 = arith.constant 0 : index
      %c0_8 = arith.constant 0 : index
      %c0_9 = arith.constant 0 : index
      %c0_10 = arith.constant 0 : index
      %18 = vector.load %arg7[%c0_7, %c0_8, %c0_9, %c0_10] : memref<1x1x8x8xbf16, #tpu.memory_space<vmem>>, vector<1x1x8x8xbf16>
      %19 = vector.shape_cast %18 : vector<1x1x8x8xbf16> to vector<8x8xbf16>
      %c0_11 = arith.constant 0 : index
      %c0_12 = arith.constant 0 : index
      %c0_13 = arith.constant 0 : index
      %20 = vector.load %arg9[%c0_11, %c0_12, %c0_13] : memref<2x8x8xbf16, #tpu.memory_space<vmem>>, vector<1x8x8xbf16>
      %21 = vector.shape_cast %20 : vector<1x8x8xbf16> to vector<8x8xbf16>
      %cst = arith.constant dense<0.000000e+00> : vector<8x8xf32>
      %22 = tpu.matmul %21, %17, %cst {dimension_numbers = #tpu.dot_dimension_numbers<[1], [1], [0], [0], [0, 0, 1, 0], [], []>} : vector<8x8xbf16>, vector<8x8xbf16>, vector<8x8xf32> -> vector<8x8xf32>
      %c0_14 = arith.constant 0 : index
      %c0_15 = arith.constant 0 : index
      %c0_16 = arith.constant 0 : index
      %23 = vector.load %arg10[%c0_14, %c0_15, %c0_16] : memref<2x8x1xf32, #tpu.memory_space<vmem>>, vector<1x8x1xf32>
      %24 = vector.shape_cast %23 : vector<1x8x1xf32> to vector<8x1xf32>
      %cst_17 = arith.constant dense<0xFF800000> : vector<8xf32>
      %25 = vector.multi_reduction <maximumf>, %22, %cst_17 [1] : vector<8x8xf32> to vector<8xf32>
      %26 = vector.shape_cast %25 : vector<8xf32> to vector<8x1xf32>
      %27 = arith.maximumf %24, %26 : vector<8x1xf32>
      %28 = arith.subf %24, %27 : vector<8x1xf32>
      %29 = math.exp %28 : vector<8x1xf32>
      %30 = vector.broadcast %27 : vector<8x1xf32> to vector<8x8xf32>
      %31 = arith.subf %22, %30 : vector<8x8xf32>
      %32 = math.exp %31 : vector<8x8xf32>
      %c0_18 = arith.constant 0 : index
      %c0_19 = arith.constant 0 : index
      %c0_20 = arith.constant 0 : index
      %33 = vector.load %arg11[%c0_18, %c0_19, %c0_20] : memref<2x8x1xf32, #tpu.memory_space<vmem>>, vector<1x8x1xf32>
      %34 = vector.shape_cast %33 : vector<1x8x1xf32> to vector<8x1xf32>
      %35 = arith.mulf %29, %34 : vector<8x1xf32>
      %cst_21 = arith.constant dense<0.000000e+00> : vector<8xf32>
      %36 = vector.multi_reduction <add>, %32, %cst_21 [1] : vector<8x8xf32> to vector<8xf32>
      %37 = vector.shape_cast %36 : vector<8xf32> to vector<8x1xf32>
      %38 = arith.addf %35, %37 : vector<8x1xf32>
      %c0_22 = arith.constant 0 : index
      %c0_23 = arith.constant 0 : index
      %c0_24 = arith.constant 0 : index
      %39 = vector.load %arg11[%c0_22, %c0_23, %c0_24] : memref<2x8x1xf32, #tpu.memory_space<vmem>>, vector<1x8x1xf32>
      %40 = vector.shape_cast %39 : vector<1x8x1xf32> to vector<8x1xf32>
      %41 = vector.shape_cast %38 : vector<8x1xf32> to vector<1x8x1xf32>
      tpu.vector_store %arg11[%c0_22, %c0_23, %c0_24], %41 {strides = array<i32>} : memref<2x8x1xf32, #tpu.memory_space<vmem>>, vector<1x8x1xf32>,
      %c0_25 = arith.constant 0 : index
      %c0_26 = arith.constant 0 : index
      %c0_27 = arith.constant 0 : index
      %42 = vector.load %arg12[%c0_25, %c0_26, %c0_27] : memref<2x8x8xf32, #tpu.memory_space<vmem>>, vector<1x8x8xf32>
      %43 = vector.shape_cast %42 : vector<1x8x8xf32> to vector<8x8xf32>
      %44 = vector.broadcast %29 : vector<8x1xf32> to vector<8x8xf32>
      %45 = arith.mulf %44, %43 : vector<8x8xf32>
      %46 = arith.truncf %32 : vector<8x8xf32> to vector<8x8xbf16>
      %cst_28 = arith.constant dense<0.000000e+00> : vector<8x8xf32>
      %47 = tpu.matmul %46, %19, %cst_28 {dimension_numbers = #tpu.dot_dimension_numbers<[1], [0], [0], [1], [0, 0, 1, 1], [], []>} : vector<8x8xbf16>, vector<8x8xbf16>, vector<8x8xf32> -> vector<8x8xf32>
      %48 = arith.addf %45, %47 : vector<8x8xf32>
      %c0_29 = arith.constant 0 : index
      %c0_30 = arith.constant 0 : index
      %c0_31 = arith.constant 0 : index
      %49 = vector.load %arg12[%c0_29, %c0_30, %c0_31] : memref<2x8x8xf32, #tpu.memory_space<vmem>>, vector<1x8x8xf32>
      %50 = vector.shape_cast %49 : vector<1x8x8xf32> to vector<8x8xf32>
      %51 = vector.shape_cast %48 : vector<8x8xf32> to vector<1x8x8xf32>
      tpu.vector_store %arg12[%c0_29, %c0_30, %c0_31], %51 {strides = array<i32>} : memref<2x8x8xf32, #tpu.memory_space<vmem>>, vector<1x8x8xf32>,
      %c0_32 = arith.constant 0 : index
      %c0_33 = arith.constant 0 : index
      %c0_34 = arith.constant 0 : index
      %52 = vector.load %arg10[%c0_32, %c0_33, %c0_34] : memref<2x8x1xf32, #tpu.memory_space<vmem>>, vector<1x8x1xf32>
      %53 = vector.shape_cast %52 : vector<1x8x1xf32> to vector<8x1xf32>
      %54 = vector.shape_cast %27 : vector<8x1xf32> to vector<1x8x1xf32>
      tpu.vector_store %arg10[%c0_32, %c0_33, %c0_34], %54 {strides = array<i32>} : memref<2x8x1xf32, #tpu.memory_space<vmem>>, vector<1x8x1xf32>,
      %c1 = arith.constant 1 : index
      %c0_35 = arith.constant 0 : index
      %c0_36 = arith.constant 0 : index
      %55 = vector.load %arg9[%c1, %c0_35, %c0_36] : memref<2x8x8xbf16, #tpu.memory_space<vmem>>, vector<1x8x8xbf16>
      %56 = vector.shape_cast %55 : vector<1x8x8xbf16> to vector<8x8xbf16>
      %cst_37 = arith.constant dense<0.000000e+00> : vector<8x8xf32>
      %57 = tpu.matmul %56, %17, %cst_37 {dimension_numbers = #tpu.dot_dimension_numbers<[1], [1], [0], [0], [0, 0, 1, 0], [], []>} : vector<8x8xbf16>, vector<8x8xbf16>, vector<8x8xf32> -> vector<8x8xf32>
      %c1_38 = arith.constant 1 : index
      %c0_39 = arith.constant 0 : index
      %c0_40 = arith.constant 0 : index
      %58 = vector.load %arg10[%c1_38, %c0_39, %c0_40] : memref<2x8x1xf32, #tpu.memory_space<vmem>>, vector<1x8x1xf32>
      %59 = vector.shape_cast %58 : vector<1x8x1xf32> to vector<8x1xf32>
      %cst_41 = arith.constant dense<0xFF800000> : vector<8xf32>
      %60 = vector.multi_reduction <maximumf>, %57, %cst_41 [1] : vector<8x8xf32> to vector<8xf32>
      %61 = vector.shape_cast %60 : vector<8xf32> to vector<8x1xf32>
      %62 = arith.maximumf %59, %61 : vector<8x1xf32>
      %63 = arith.subf %59, %62 : vector<8x1xf32>
      %64 = math.exp %63 : vector<8x1xf32>
      %65 = vector.broadcast %62 : vector<8x1xf32> to vector<8x8xf32>
      %66 = arith.subf %57, %65 : vector<8x8xf32>
      %67 = math.exp %66 : vector<8x8xf32>
      %c1_42 = arith.constant 1 : index
      %c0_43 = arith.constant 0 : index
      %c0_44 = arith.constant 0 : index
      %68 = vector.load %arg11[%c1_42, %c0_43, %c0_44] : memref<2x8x1xf32, #tpu.memory_space<vmem>>, vector<1x8x1xf32>
      %69 = vector.shape_cast %68 : vector<1x8x1xf32> to vector<8x1xf32>
      %70 = arith.mulf %64, %69 : vector<8x1xf32>
      %cst_45 = arith.constant dense<0.000000e+00> : vector<8xf32>
      %71 = vector.multi_reduction <add>, %67, %cst_45 [1] : vector<8x8xf32> to vector<8xf32>
      %72 = vector.shape_cast %71 : vector<8xf32> to vector<8x1xf32>
      %73 = arith.addf %70, %72 : vector<8x1xf32>
      %c1_46 = arith.constant 1 : index
      %c0_47 = arith.constant 0 : index
      %c0_48 = arith.constant 0 : index
      %74 = vector.load %arg11[%c1_46, %c0_47, %c0_48] : memref<2x8x1xf32, #tpu.memory_space<vmem>>, vector<1x8x1xf32>
      %75 = vector.shape_cast %74 : vector<1x8x1xf32> to vector<8x1xf32>
      %76 = vector.shape_cast %73 : vector<8x1xf32> to vector<1x8x1xf32>
      tpu.vector_store %arg11[%c1_46, %c0_47, %c0_48], %76 {strides = array<i32>} : memref<2x8x1xf32, #tpu.memory_space<vmem>>, vector<1x8x1xf32>,
      %c1_49 = arith.constant 1 : index
      %c0_50 = arith.constant 0 : index
      %c0_51 = arith.constant 0 : index
      %77 = vector.load %arg12[%c1_49, %c0_50, %c0_51] : memref<2x8x8xf32, #tpu.memory_space<vmem>>, vector<1x8x8xf32>
      %78 = vector.shape_cast %77 : vector<1x8x8xf32> to vector<8x8xf32>
      %79 = vector.broadcast %64 : vector<8x1xf32> to vector<8x8xf32>
      %80 = arith.mulf %79, %78 : vector<8x8xf32>
      %81 = arith.truncf %67 : vector<8x8xf32> to vector<8x8xbf16>
      %cst_52 = arith.constant dense<0.000000e+00> : vector<8x8xf32>
      %82 = tpu.matmul %81, %19, %cst_52 {dimension_numbers = #tpu.dot_dimension_numbers<[1], [0], [0], [1], [0, 0, 1, 1], [], []>} : vector<8x8xbf16>, vector<8x8xbf16>, vector<8x8xf32> -> vector<8x8xf32>
      %83 = arith.addf %80, %82 : vector<8x8xf32>
      %c1_53 = arith.constant 1 : index
      %c0_54 = arith.constant 0 : index
      %c0_55 = arith.constant 0 : index
      %84 = vector.load %arg12[%c1_53, %c0_54, %c0_55] : memref<2x8x8xf32, #tpu.memory_space<vmem>>, vector<1x8x8xf32>
      %85 = vector.shape_cast %84 : vector<1x8x8xf32> to vector<8x8xf32>
      %86 = vector.shape_cast %83 : vector<8x8xf32> to vector<1x8x8xf32>
      tpu.vector_store %arg12[%c1_53, %c0_54, %c0_55], %86 {strides = array<i32>} : memref<2x8x8xf32, #tpu.memory_space<vmem>>, vector<1x8x8xf32>,
      %c1_56 = arith.constant 1 : index
      %c0_57 = arith.constant 0 : index
      %c0_58 = arith.constant 0 : index
      %87 = vector.load %arg10[%c1_56, %c0_57, %c0_58] : memref<2x8x1xf32, #tpu.memory_space<vmem>>, vector<1x8x1xf32>
      %88 = vector.shape_cast %87 : vector<1x8x1xf32> to vector<8x1xf32>
      %89 = vector.shape_cast %62 : vector<8x1xf32> to vector<1x8x1xf32>
      tpu.vector_store %arg10[%c1_56, %c0_57, %c0_58], %89 {strides = array<i32>} : memref<2x8x1xf32, #tpu.memory_space<vmem>>, vector<1x8x1xf32>,
    } else {
    }
    %10 = arith.cmpi eq, %3, %1 : i32
    %11 = arith.extui %10 : i1 to i32
    %c0_i32_2 = arith.constant 0 : i32
    %12 = arith.cmpi ne, %11, %c0_i32_2 : i32
    scf.if %12 {
      %16 = tpu.iota {dimensions = array<i32: 0>} : vector<8x8xi32>
      %17 = tpu.iota {dimensions = array<i32: 1>} : vector<8x8xi32>
      %18 = arith.cmpi sle, %17, %16 : vector<8x8xi32>
      %c0 = arith.constant 0 : index
      %c0_4 = arith.constant 0 : index
      %c0_5 = arith.constant 0 : index
      %c0_6 = arith.constant 0 : index
      %19 = vector.load %arg6[%c0, %c0_4, %c0_5, %c0_6] : memref<1x1x8x8xbf16, #tpu.memory_space<vmem>>, vector<1x1x8x8xbf16>
      %20 = vector.shape_cast %19 : vector<1x1x8x8xbf16> to vector<8x8xbf16>
      %c0_7 = arith.constant 0 : index
      %c0_8 = arith.constant 0 : index
      %c0_9 = arith.constant 0 : index
      %c0_10 = arith.constant 0 : index
      %21 = vector.load %arg7[%c0_7, %c0_8, %c0_9, %c0_10] : memref<1x1x8x8xbf16, #tpu.memory_space<vmem>>, vector<1x1x8x8xbf16>
      %22 = vector.shape_cast %21 : vector<1x1x8x8xbf16> to vector<8x8xbf16>
      %c0_11 = arith.constant 0 : index
      %c0_12 = arith.constant 0 : index
      %c0_13 = arith.constant 0 : index
      %23 = vector.load %arg9[%c0_11, %c0_12, %c0_13] : memref<2x8x8xbf16, #tpu.memory_space<vmem>>, vector<1x8x8xbf16>
      %24 = vector.shape_cast %23 : vector<1x8x8xbf16> to vector<8x8xbf16>
      %cst = arith.constant dense<0.000000e+00> : vector<8x8xf32>
      %25 = tpu.matmul %24, %20, %cst {dimension_numbers = #tpu.dot_dimension_numbers<[1], [1], [0], [0], [0, 0, 1, 0], [], []>} : vector<8x8xbf16>, vector<8x8xbf16>, vector<8x8xf32> -> vector<8x8xf32>
      %cst_14 = arith.constant -1.000000e+30 : f32
      %26 = vector.broadcast %cst_14 : f32 to vector<8x8xf32>
      %27 = arith.select %18, %25, %26 : vector<8x8xi1>, vector<8x8xf32>
      %c0_15 = arith.constant 0 : index
      %c0_16 = arith.constant 0 : index
      %c0_17 = arith.constant 0 : index
      %28 = vector.load %arg10[%c0_15, %c0_16, %c0_17] : memref<2x8x1xf32, #tpu.memory_space<vmem>>, vector<1x8x1xf32>
      %29 = vector.shape_cast %28 : vector<1x8x1xf32> to vector<8x1xf32>
      %cst_18 = arith.constant dense<0xFF800000> : vector<8xf32>
      %30 = vector.multi_reduction <maximumf>, %27, %cst_18 [1] : vector<8x8xf32> to vector<8xf32>
      %31 = vector.shape_cast %30 : vector<8xf32> to vector<8x1xf32>
      %32 = arith.maximumf %29, %31 : vector<8x1xf32>
      %33 = arith.subf %29, %32 : vector<8x1xf32>
      %34 = math.exp %33 : vector<8x1xf32>
      %35 = vector.broadcast %32 : vector<8x1xf32> to vector<8x8xf32>
      %36 = arith.subf %27, %35 : vector<8x8xf32>
      %37 = math.exp %36 : vector<8x8xf32>
      %c0_19 = arith.constant 0 : index
      %c0_20 = arith.constant 0 : index
      %c0_21 = arith.constant 0 : index
      %38 = vector.load %arg11[%c0_19, %c0_20, %c0_21] : memref<2x8x1xf32, #tpu.memory_space<vmem>>, vector<1x8x1xf32>
      %39 = vector.shape_cast %38 : vector<1x8x1xf32> to vector<8x1xf32>
      %40 = arith.mulf %34, %39 : vector<8x1xf32>
      %cst_22 = arith.constant dense<0.000000e+00> : vector<8xf32>
      %41 = vector.multi_reduction <add>, %37, %cst_22 [1] : vector<8x8xf32> to vector<8xf32>
      %42 = vector.shape_cast %41 : vector<8xf32> to vector<8x1xf32>
      %43 = arith.addf %40, %42 : vector<8x1xf32>
      %c0_23 = arith.constant 0 : index
      %c0_24 = arith.constant 0 : index
      %c0_25 = arith.constant 0 : index
      %44 = vector.load %arg11[%c0_23, %c0_24, %c0_25] : memref<2x8x1xf32, #tpu.memory_space<vmem>>, vector<1x8x1xf32>
      %45 = vector.shape_cast %44 : vector<1x8x1xf32> to vector<8x1xf32>
      %46 = vector.shape_cast %43 : vector<8x1xf32> to vector<1x8x1xf32>
      tpu.vector_store %arg11[%c0_23, %c0_24, %c0_25], %46 {strides = array<i32>} : memref<2x8x1xf32, #tpu.memory_space<vmem>>, vector<1x8x1xf32>,
      %c0_26 = arith.constant 0 : index
      %c0_27 = arith.constant 0 : index
      %c0_28 = arith.constant 0 : index
      %47 = vector.load %arg12[%c0_26, %c0_27, %c0_28] : memref<2x8x8xf32, #tpu.memory_space<vmem>>, vector<1x8x8xf32>
      %48 = vector.shape_cast %47 : vector<1x8x8xf32> to vector<8x8xf32>
      %49 = vector.broadcast %34 : vector<8x1xf32> to vector<8x8xf32>
      %50 = arith.mulf %49, %48 : vector<8x8xf32>
      %51 = arith.truncf %37 : vector<8x8xf32> to vector<8x8xbf16>
      %cst_29 = arith.constant dense<0.000000e+00> : vector<8x8xf32>
      %52 = tpu.matmul %51, %22, %cst_29 {dimension_numbers = #tpu.dot_dimension_numbers<[1], [0], [0], [1], [0, 0, 1, 1], [], []>} : vector<8x8xbf16>, vector<8x8xbf16>, vector<8x8xf32> -> vector<8x8xf32>
      %53 = arith.addf %50, %52 : vector<8x8xf32>
      %c0_30 = arith.constant 0 : index
      %c0_31 = arith.constant 0 : index
      %c0_32 = arith.constant 0 : index
      %54 = vector.load %arg12[%c0_30, %c0_31, %c0_32] : memref<2x8x8xf32, #tpu.memory_space<vmem>>, vector<1x8x8xf32>
      %55 = vector.shape_cast %54 : vector<1x8x8xf32> to vector<8x8xf32>
      %56 = vector.shape_cast %53 : vector<8x8xf32> to vector<1x8x8xf32>
      tpu.vector_store %arg12[%c0_30, %c0_31, %c0_32], %56 {strides = array<i32>} : memref<2x8x8xf32, #tpu.memory_space<vmem>>, vector<1x8x8xf32>,
      %c0_33 = arith.constant 0 : index
      %c0_34 = arith.constant 0 : index
      %c0_35 = arith.constant 0 : index
      %57 = vector.load %arg10[%c0_33, %c0_34, %c0_35] : memref<2x8x1xf32, #tpu.memory_space<vmem>>, vector<1x8x1xf32>
      %58 = vector.shape_cast %57 : vector<1x8x1xf32> to vector<8x1xf32>
      %59 = vector.shape_cast %32 : vector<8x1xf32> to vector<1x8x1xf32>
      tpu.vector_store %arg10[%c0_33, %c0_34, %c0_35], %59 {strides = array<i32>} : memref<2x8x1xf32, #tpu.memory_space<vmem>>, vector<1x8x1xf32>,
      %c1 = arith.constant 1 : index
      %c0_36 = arith.constant 0 : index
      %c0_37 = arith.constant 0 : index
      %60 = vector.load %arg9[%c1, %c0_36, %c0_37] : memref<2x8x8xbf16, #tpu.memory_space<vmem>>, vector<1x8x8xbf16>
      %61 = vector.shape_cast %60 : vector<1x8x8xbf16> to vector<8x8xbf16>
      %cst_38 = arith.constant dense<0.000000e+00> : vector<8x8xf32>
      %62 = tpu.matmul %61, %20, %cst_38 {dimension_numbers = #tpu.dot_dimension_numbers<[1], [1], [0], [0], [0, 0, 1, 0], [], []>} : vector<8x8xbf16>, vector<8x8xbf16>, vector<8x8xf32> -> vector<8x8xf32>
      %cst_39 = arith.constant -1.000000e+30 : f32
      %63 = vector.broadcast %cst_39 : f32 to vector<8x8xf32>
      %64 = arith.select %18, %62, %63 : vector<8x8xi1>, vector<8x8xf32>
      %c1_40 = arith.constant 1 : index
      %c0_41 = arith.constant 0 : index
      %c0_42 = arith.constant 0 : index
      %65 = vector.load %arg10[%c1_40, %c0_41, %c0_42] : memref<2x8x1xf32, #tpu.memory_space<vmem>>, vector<1x8x1xf32>
      %66 = vector.shape_cast %65 : vector<1x8x1xf32> to vector<8x1xf32>
      %cst_43 = arith.constant dense<0xFF800000> : vector<8xf32>
      %67 = vector.multi_reduction <maximumf>, %64, %cst_43 [1] : vector<8x8xf32> to vector<8xf32>
      %68 = vector.shape_cast %67 : vector<8xf32> to vector<8x1xf32>
      %69 = arith.maximumf %66, %68 : vector<8x1xf32>
      %70 = arith.subf %66, %69 : vector<8x1xf32>
      %71 = math.exp %70 : vector<8x1xf32>
      %72 = vector.broadcast %69 : vector<8x1xf32> to vector<8x8xf32>
      %73 = arith.subf %64, %72 : vector<8x8xf32>
      %74 = math.exp %73 : vector<8x8xf32>
      %c1_44 = arith.constant 1 : index
      %c0_45 = arith.constant 0 : index
      %c0_46 = arith.constant 0 : index
      %75 = vector.load %arg11[%c1_44, %c0_45, %c0_46] : memref<2x8x1xf32, #tpu.memory_space<vmem>>, vector<1x8x1xf32>
      %76 = vector.shape_cast %75 : vector<1x8x1xf32> to vector<8x1xf32>
      %77 = arith.mulf %71, %76 : vector<8x1xf32>
      %cst_47 = arith.constant dense<0.000000e+00> : vector<8xf32>
      %78 = vector.multi_reduction <add>, %74, %cst_47 [1] : vector<8x8xf32> to vector<8xf32>
      %79 = vector.shape_cast %78 : vector<8xf32> to vector<8x1xf32>
      %80 = arith.addf %77, %79 : vector<8x1xf32>
      %c1_48 = arith.constant 1 : index
      %c0_49 = arith.constant 0 : index
      %c0_50 = arith.constant 0 : index
      %81 = vector.load %arg11[%c1_48, %c0_49, %c0_50] : memref<2x8x1xf32, #tpu.memory_space<vmem>>, vector<1x8x1xf32>
      %82 = vector.shape_cast %81 : vector<1x8x1xf32> to vector<8x1xf32>
      %83 = vector.shape_cast %80 : vector<8x1xf32> to vector<1x8x1xf32>
      tpu.vector_store %arg11[%c1_48, %c0_49, %c0_50], %83 {strides = array<i32>} : memref<2x8x1xf32, #tpu.memory_space<vmem>>, vector<1x8x1xf32>,
      %c1_51 = arith.constant 1 : index
      %c0_52 = arith.constant 0 : index
      %c0_53 = arith.constant 0 : index
      %84 = vector.load %arg12[%c1_51, %c0_52, %c0_53] : memref<2x8x8xf32, #tpu.memory_space<vmem>>, vector<1x8x8xf32>
      %85 = vector.shape_cast %84 : vector<1x8x8xf32> to vector<8x8xf32>
      %86 = vector.broadcast %71 : vector<8x1xf32> to vector<8x8xf32>
      %87 = arith.mulf %86, %85 : vector<8x8xf32>
      %88 = arith.truncf %74 : vector<8x8xf32> to vector<8x8xbf16>
      %cst_54 = arith.constant dense<0.000000e+00> : vector<8x8xf32>
      %89 = tpu.matmul %88, %22, %cst_54 {dimension_numbers = #tpu.dot_dimension_numbers<[1], [0], [0], [1], [0, 0, 1, 1], [], []>} : vector<8x8xbf16>, vector<8x8xbf16>, vector<8x8xf32> -> vector<8x8xf32>
      %90 = arith.addf %87, %89 : vector<8x8xf32>
      %c1_55 = arith.constant 1 : index
      %c0_56 = arith.constant 0 : index
      %c0_57 = arith.constant 0 : index
      %91 = vector.load %arg12[%c1_55, %c0_56, %c0_57] : memref<2x8x8xf32, #tpu.memory_space<vmem>>, vector<1x8x8xf32>
      %92 = vector.shape_cast %91 : vector<1x8x8xf32> to vector<8x8xf32>
      %93 = vector.shape_cast %90 : vector<8x8xf32> to vector<1x8x8xf32>
      tpu.vector_store %arg12[%c1_55, %c0_56, %c0_57], %93 {strides = array<i32>} : memref<2x8x8xf32, #tpu.memory_space<vmem>>, vector<1x8x8xf32>,
      %c1_58 = arith.constant 1 : index
      %c0_59 = arith.constant 0 : index
      %c0_60 = arith.constant 0 : index
      %94 = vector.load %arg10[%c1_58, %c0_59, %c0_60] : memref<2x8x1xf32, #tpu.memory_space<vmem>>, vector<1x8x1xf32>
      %95 = vector.shape_cast %94 : vector<1x8x1xf32> to vector<8x1xf32>
      %96 = vector.shape_cast %69 : vector<8x1xf32> to vector<1x8x1xf32>
      tpu.vector_store %arg10[%c1_58, %c0_59, %c0_60], %96 {strides = array<i32>} : memref<2x8x1xf32, #tpu.memory_space<vmem>>, vector<1x8x1xf32>,
    } else {
    }
    %13 = arith.cmpi eq, %3, %1 : i32
    %14 = arith.extui %13 : i1 to i32
    %c0_i32_3 = arith.constant 0 : i32
    %15 = arith.cmpi ne, %14, %c0_i32_3 : i32
    scf.if %15 {
      %c0 = arith.constant 0 : index
      %c0_4 = arith.constant 0 : index
      %c0_5 = arith.constant 0 : index
      %16 = vector.load %arg11[%c0, %c0_4, %c0_5] : memref<2x8x1xf32, #tpu.memory_space<vmem>>, vector<1x8x1xf32>
      %17 = vector.shape_cast %16 : vector<1x8x1xf32> to vector<8x1xf32>
      %18 = tpu.reciprocal %17 {approx = true} : vector<8x1xf32> -> vector<8x1xf32>
      %c0_6 = arith.constant 0 : index
      %c0_7 = arith.constant 0 : index
      %c0_8 = arith.constant 0 : index
      %19 = vector.load %arg12[%c0_6, %c0_7, %c0_8] : memref<2x8x8xf32, #tpu.memory_space<vmem>>, vector<1x8x8xf32>
      %20 = vector.shape_cast %19 : vector<1x8x8xf32> to vector<8x8xf32>
      %21 = vector.broadcast %18 : vector<8x1xf32> to vector<8x8xf32>
      %22 = arith.mulf %20, %21 : vector<8x8xf32>
      %23 = arith.truncf %22 : vector<8x8xf32> to vector<8x8xbf16>
      %c0_9 = arith.constant 0 : index
      %c0_10 = arith.constant 0 : index
      %c0_11 = arith.constant 0 : index
      %c0_12 = arith.constant 0 : index
      %c0_13 = arith.constant 0 : index
      %24 = vector.load %arg8[%c0_9, %c0_10, %c0_11, %c0_12, %c0_13] : memref<1x8x1x2x8xbf16, #tpu.memory_space<vmem>>, vector<1x8x1x1x8xbf16>
      %25 = vector.shape_cast %24 : vector<1x8x1x1x8xbf16> to vector<8x8xbf16>
      %26 = vector.shape_cast %23 : vector<8x8xbf16> to vector<1x8x1x1x8xbf16>
      tpu.vector_store %arg8[%c0_9, %c0_10, %c0_11, %c0_12, %c0_13], %26 {strides = array<i32>} : memref<1x8x1x2x8xbf16, #tpu.memory_space<vmem>>, vector<1x8x1x1x8xbf16>,
      %c1 = arith.constant 1 : index
      %c0_14 = arith.constant 0 : index
      %c0_15 = arith.constant 0 : index
      %27 = vector.load %arg11[%c1, %c0_14, %c0_15] : memref<2x8x1xf32, #tpu.memory_space<vmem>>, vector<1x8x1xf32>
      %28 = vector.shape_cast %27 : vector<1x8x1xf32> to vector<8x1xf32>
      %29 = tpu.reciprocal %28 {approx = true} : vector<8x1xf32> -> vector<8x1xf32>
      %c1_16 = arith.constant 1 : index
      %c0_17 = arith.constant 0 : index
      %c0_18 = arith.constant 0 : index
      %30 = vector.load %arg12[%c1_16, %c0_17, %c0_18] : memref<2x8x8xf32, #tpu.memory_space<vmem>>, vector<1x8x8xf32>
      %31 = vector.shape_cast %30 : vector<1x8x8xf32> to vector<8x8xf32>
      %32 = vector.broadcast %29 : vector<8x1xf32> to vector<8x8xf32>
      %33 = arith.mulf %31, %32 : vector<8x8xf32>
      %34 = arith.truncf %33 : vector<8x8xf32> to vector<8x8xbf16>
      %c0_19 = arith.constant 0 : index
      %c0_20 = arith.constant 0 : index
      %c0_21 = arith.constant 0 : index
      %c1_22 = arith.constant 1 : index
      %c0_23 = arith.constant 0 : index
      %35 = vector.load %arg8[%c0_19, %c0_20, %c0_21, %c1_22, %c0_23] : memref<1x8x1x2x8xbf16, #tpu.memory_space<vmem>>, vector<1x8x1x1x8xbf16>
      %36 = vector.shape_cast %35 : vector<1x8x1x1x8xbf16> to vector<8x8xbf16>
      %37 = vector.shape_cast %34 : vector<8x8xbf16> to vector<1x8x1x1x8xbf16>
      tpu.vector_store %arg8[%c0_19, %c0_20, %c0_21, %c1_22, %c0_23], %37 {strides = array<i32>} : memref<1x8x1x2x8xbf16, #tpu.memory_space<vmem>>, vector<1x8x1x1x8xbf16>,
    } else {
    }
    return
  }
  func.func @transform_0(%arg0: i32, %arg1: i32, %arg2: i32, %arg3: memref<1xi32, #tpu.memory_space<smem>>, %arg4: memref<1xi32, #tpu.memory_space<smem>>) -> (i32, i32, i32, i32, i32) {
    %0 = arith.index_cast %arg2 : i32 to index
    %1 = memref.load %arg3[%0] : memref<1xi32, #tpu.memory_space<smem>>
    %c0_i32 = arith.constant 0 : i32
    %c0_i32_0 = arith.constant 0 : i32
    %c0_i32_1 = arith.constant 0 : i32
    return %arg0, %1, %arg1, %c0_i32, %c0_i32_0 : i32, i32, i32, i32, i32
  }
  func.func @transform_1(%arg0: i32, %arg1: i32, %arg2: i32, %arg3: memref<1xi32, #tpu.memory_space<smem>>, %arg4: memref<1xi32, #tpu.memory_space<smem>>) -> (i32, i32, i32, i32) {
    %0 = arith.index_cast %arg2 : i32 to index
    %1 = memref.load %arg4[%0] : memref<1xi32, #tpu.memory_space<smem>>
    %c0_i32 = arith.constant 0 : i32
    %c0_i32_0 = arith.constant 0 : i32
    return %arg0, %arg1, %1, %c0_i32 : i32, i32, i32, i32
  }
  func.func @transform_2(%arg0: i32, %arg1: i32, %arg2: i32, %arg3: memref<1xi32, #tpu.memory_space<smem>>, %arg4: memref<1xi32, #tpu.memory_space<smem>>) -> (i32, i32, i32, i32) {
    %0 = arith.index_cast %arg2 : i32 to index
    %1 = memref.load %arg4[%0] : memref<1xi32, #tpu.memory_space<smem>>
    %c0_i32 = arith.constant 0 : i32
    %c0_i32_0 = arith.constant 0 : i32
    return %arg0, %arg1, %1, %c0_i32 : i32, i32, i32, i32
  }
  func.func @transform_3(%arg0: i32, %arg1: i32, %arg2: i32, %arg3: memref<1xi32, #tpu.memory_space<smem>>, %arg4: memref<1xi32, #tpu.memory_space<smem>>) -> (i32, i32, i32, i32, i32) {
    %0 = arith.index_cast %arg2 : i32 to index
    %1 = memref.load %arg3[%0] : memref<1xi32, #tpu.memory_space<smem>>
    %c0_i32 = arith.constant 0 : i32
    %c0_i32_0 = arith.constant 0 : i32
    %c0_i32_1 = arith.constant 0 : i32
    return %arg0, %1, %arg1, %c0_i32, %c0_i32_0 : i32, i32, i32, i32, i32
  }
}

</mosaic_0001>

<llo_original>
// kernel: causal_self_attention.5
$region0: #{causal_self_attention.5}
  #allocation0 [shape = 'u32[]', space=smem, size = 0x4, offset = 0x4, fixed_abs, tag = 'smem constant byte address 0x4 - core index']
  #allocation1 [shape = 'u32[72,128]{1,0:T(1,128)}', space=vmem, size = 0x9000, scoped, tag = 'internal scratch']
  %s0 = inlined_call_operand.vmem [shape: bf16[2,8,32], index: 0, kind: input, shape index: {}]
  %s1 = inlined_call_operand.vmem [shape: bf16[32,32], index: 1, kind: input, shape index: {}]
  %s2 = inlined_call_operand.vmem [shape: f32[1,32], index: 2, kind: input, shape index: {}]
  %s3 = inlined_call_operand.hbm [shape: f32[2,8,32], index: 3, kind: output, shape index: {}]
  %s4 = sld [smem:[#allocation0]]
  $region45: #{causal_self_attention.5} parent=0
    _
  %s6 = ssub.s32 1, %s4
  %s7 = scalar_select 0, %s6, %s4
  $region1: #{causal_self_attention.5} parent=0
    #allocation2 [shape = 'u8[8192]{0}', space=vmem, size = 0x2000, scoped, tag = 'output window, operand 0']
    #allocation3 [shape = 's32[2]{0}', space=sflag, size = 0x8, scoped, tag = 'scoped memory for causal_self_attention.5']
    %8 = vsyncpa [#allocation3], 0
    %s9 = scalar_lea.sflag [#allocation3], 1
    %10 = vsyncpa %s9, 0
    loop: start=0, step=1, limit=4
    $region2: #{causal_self_attention.5} parent=1 // loop_pre_header
      _
    $region3: #{causal_self_attention.5} parent=1 // loop_header
      %s12 = sphi 0, %s16
      %p13 = scmp.ge.s32.totalorder %s12, 4
      %s19 = sphi 0, %s31
      %s20 = sphi 0, %s27
      %s21 = sphi 0, %s19
      %s22 = sphi 0, %s20
      %s23 = sphi 0, %s21
      %s24 = sphi 0, %s22
      %s36 = sphi 0, %s38
      %s39 = sphi 0, %s36
      %s40 = sphi 0, %s39
      %s56 = sphi 0, %s40
      %s60 = sphi 0, %s60
      %s62 = sphi 0, %s60
      %s63 = sphi 0, %s62
      %s77 = sphi 0, %s63
      %s81 = sphi 0, %s81
      %s83 = sphi 0, %s81
      %s84 = sphi 0, %s83
      %s98 = sphi 0, %s84
      %s106 = sphi 0, %s108
      %s109 = sphi 0, %s106
      %s110 = sphi 0, %s109
      %s126 = sphi 0, %s110
    $region4: #{causal_self_attention.5} parent=1 // loop_header_branch
      %15 = sbr.rel (%p13) target = $region8
    $region5: #{causal_self_attention.5} parent=1 // loop_body
      %s17 = ssub.s32 %s12, 1
      %s18 = ssub.s32 %s12, 2
      %s25 = sadd.s32 1, %s20
      %p26 = scmp.ge.s32.totalorder %s25, 1
      %s27 = scalar_select %p26, 0, %s25
      %s28 = sadd.s32 1, %s19
      %s29 = scalar_select %p26, %s28, %s19
      %p30 = scmp.ge.s32.totalorder %s29, 2
      %s31 = scalar_select %p30, 0, %s29
      %s32 = ssub.s32 %s19, %s31
      %s33 = ssub.s32 %s20, %s27
      %s34 = sor.u32 %s32, %s33
      %p35 = scmp.eq.s32.totalorder %s34, 0
      %s37 = sadd.s32 %s36, 1
      %s38 = scalar_select %p35, %s36, %s37
      %p41 = pneg %p35
      %p42 = scmp.eq.s32.totalorder %s12, 1
      %p43 = por %p41, %p42
      %p44 = scmp.ne.s32.totalorder %s36, %s39
      %p45 = scmp.eq.s32.totalorder %s12, 0
      %p46 = por %p44, %p45
      %p47 = scmp.ne.s32.totalorder %s36, %s39
      %p48 = scmp.eq.s32.totalorder %s17, 1
      %p49 = por %p47, %p48
      %p50 = scmp.ne.s32.totalorder %s39, %s40
      %p51 = scmp.eq.s32.totalorder %s17, 0
      %p52 = por %p50, %p51
      %p53 = scmp.ne.s32.totalorder %s39, %s40
      %p54 = scmp.eq.s32.totalorder %s18, 1
      %p55 = por %p53, %p54
      %p57 = scmp.ne.s32.totalorder %s40, %s56
      %p58 = scmp.eq.s32.totalorder %s18, 0
      %p59 = por %p57, %p58
      %s61 = sadd.s32 %s60, 1
      %p64 = scmp.eq.s32.totalorder %s12, 1
      %p65 = scmp.ne.s32.totalorder %s60, %s62
      %p66 = scmp.eq.s32.totalorder %s12, 0
      %p67 = por %p65, %p66
      %p68 = scmp.ne.s32.totalorder %s60, %s62
      %p69 = scmp.eq.s32.totalorder %s17, 1
      %p70 = por %p68, %p69
      %p71 = scmp.ne.s32.totalorder %s62, %s63
      %p72 = scmp.eq.s32.totalorder %s17, 0
      %p73 = por %p71, %p72
      %p74 = scmp.ne.s32.totalorder %s62, %s63
      %p75 = scmp.eq.s32.totalorder %s18, 1
      %p76 = por %p74, %p75
      %p78 = scmp.ne.s32.totalorder %s63, %s77
      %p79 = scmp.eq.s32.totalorder %s18, 0
      %p80 = por %p78, %p79
      %s82 = sadd.s32 %s81, 1
      %p85 = scmp.eq.s32.totalorder %s12, 1
      %p86 = scmp.ne.s32.totalorder %s81, %s83
      %p87 = scmp.eq.s32.totalorder %s12, 0
      %p88 = por %p86, %p87
      %p89 = scmp.ne.s32.totalorder %s81, %s83
      %p90 = scmp.eq.s32.totalorder %s17, 1
      %p91 = por %p89, %p90
      %p92 = scmp.ne.s32.totalorder %s83, %s84
      %p93 = scmp.eq.s32.totalorder %s17, 0
      %p94 = por %p92, %p93
      %p95 = scmp.ne.s32.totalorder %s83, %s84
      %p96 = scmp.eq.s32.totalorder %s18, 1
      %p97 = por %p95, %p96
      %p99 = scmp.ne.s32.totalorder %s84, %s98
      %p100 = scmp.eq.s32.totalorder %s18, 0
      %p101 = por %p99, %p100
      %s102 = ssub.s32 %s19, %s31
      %s103 = ssub.s32 %s20, %s27
      %s104 = sor.u32 %s102, %s103
      %p105 = scmp.eq.s32.totalorder %s104, 0
      %s107 = sadd.s32 %s106, 1
      %s108 = scalar_select %p105, %s106, %s107
      %p111 = pneg %p105
      %p112 = scmp.eq.s32.totalorder %s12, 1
      %p113 = por %p111, %p112
      %p114 = scmp.ne.s32.totalorder %s106, %s109
      %p115 = scmp.eq.s32.totalorder %s12, 0
      %p116 = por %p114, %p115
      %p117 = scmp.ne.s32.totalorder %s106, %s109
      %p118 = scmp.eq.s32.totalorder %s17, 1
      %p119 = por %p117, %p118
      %p120 = scmp.ne.s32.totalorder %s109, %s110
      %p121 = scmp.eq.s32.totalorder %s17, 0
      %p122 = por %p120, %p121
      %p123 = scmp.ne.s32.totalorder %s109, %s110
      %p124 = scmp.eq.s32.totalorder %s18, 1
      %p125 = por %p123, %p124
      %p127 = scmp.ne.s32.totalorder %s110, %s126
      %p128 = scmp.eq.s32.totalorder %s18, 0
      %p129 = por %p127, %p128
      %p130 = scmp.le.s32.totalorder 1, %s12
      %p131 = scmp.lt.s32.totalorder %s12, 3
      %p132 = pnand %p130, %p131
      %p133 = pneg %p132
      // Predicated region
      $region9: #{causal_self_attention.5} parent=5 // pred_check
        _
      $region10: #{causal_self_attention.5} parent=5 // pred_check_branch
        %135 = sbr.rel (%p132) target = $region12
      $region11: #{causal_self_attention.5} parent=5 // pred_region
        %s136 = ssub.s32 %s12, 1
        // Predicated region
        $region13: #{causal_self_attention.5} parent=11 // pred_check
          %p137 = pneg %p73
        $region14: #{causal_self_attention.5} parent=11 // pred_check_branch
          %139 = sbr.rel (%p137) target = $region16
        $region15: #{causal_self_attention.5} parent=11 // pred_region
          _
        $region16: #{causal_self_attention.5} parent=11 // pred_fallthru
          _
        // Predicated region
        $region17: #{causal_self_attention.5} parent=11 // pred_check
          %p140 = pneg %p94
        $region18: #{causal_self_attention.5} parent=11 // pred_check_branch
          %142 = sbr.rel (%p140) target = $region20
        $region19: #{causal_self_attention.5} parent=11 // pred_region
          _
        $region20: #{causal_self_attention.5} parent=11 // pred_fallthru
          _
      $region12: #{causal_self_attention.5} parent=5 // pred_fallthru
        _
      %p143 = scmp.lt.s32.totalorder %s12, 2
      // Predicated region
      $region21: #{causal_self_attention.5} parent=5 // pred_check
        %p144 = pneg %p143
      $region22: #{causal_self_attention.5} parent=5 // pred_check_branch
        %146 = sbr.rel (%p144) target = $region24
      $region23: #{causal_self_attention.5} parent=5 // pred_region
        // Predicated region
        $region25: #{causal_self_attention.5} parent=23 // pred_check
          %p147 = pneg %p46
        $region26: #{causal_self_attention.5} parent=23 // pred_check_branch
          %149 = sbr.rel (%p147) target = $region28
        $region27: #{causal_self_attention.5} parent=23 // pred_region
          %p150 = scmp.lt.s32.totalorder %s19, 1
          %s151 = scalar_select %p150, %s19, 1
          %p152 = scmp.lt.s32.totalorder %s20, 0
          %s153 = scalar_select %p152, %s20, 0
          %s154 = sadd.s32 %s153, %s151
          %s155 = smul.addr %s154, 4
          %s156 = scalar_lea.vmem %s0, %s155
        $region28: #{causal_self_attention.5} parent=23 // pred_fallthru
          _
      $region24: #{causal_self_attention.5} parent=5 // pred_fallthru
        _
      %p157 = scmp.le.s32.totalorder 1, %s12
      %p158 = scmp.lt.s32.totalorder %s12, 3
      %p159 = pnand %p157, %p158
      %p160 = pneg %p159
      // Predicated region
      $region29: #{causal_self_attention.5} parent=5 // pred_check
        _
      $region30: #{causal_self_attention.5} parent=5 // pred_check_branch
        %162 = sbr.rel (%p159) target = $region32
      $region31: #{causal_self_attention.5} parent=5 // pred_region
        %s163 = ssub.s32 %s12, 1
        %p164 = scmp.lt.s32.totalorder %s21, 1
        %s165 = scalar_select %p164, %s21, 1
        %p166 = scmp.lt.s32.totalorder %s22, 0
        %s167 = scalar_select %p166, %s22, 0
        %s168 = sadd.s32 %s167, %s165
        %s169 = smul.addr %s168, 4
        %s170 = scalar_lea.vmem %s0, %s169
        %p171 = pneg %p52
        %p172 = pneg %p49
        %p173 = pneg %p73
        %p174 = pneg %p70
        %p175 = pneg %p94
        %p176 = pneg %p91
        %p177 = pneg %p122
        %p178 = pneg %p119
        %s179 = sand.u32 %s109, 1
        %s180 = scalar_lea.sflag [#allocation3], %s179
        %s181 = sand.u32 %s109, 1
        %s182 = smul.addr %s181, 8
        %s183 = scalar_lea.vmem [#allocation2], %s182
        %p184 = scmp.lt.s32.totalorder %s21, 1
        %s185 = scalar_select %p184, %s21, 1
        %p186 = scmp.lt.s32.totalorder %s22, 0
        %s187 = scalar_select %p186, %s22, 0
        %s188 = sadd.s32 %s187, %s185
        %s189 = smul.addr %s188, 4
        %s190 = scalar_lea.vmem %s0, %s189
        %v192 = vld [vmem:[%s190] sm:$0xf]
        %v193 = vld [vmem:[%s1] sm:$0xf]
        %v194 = vld [vmem:[%s1 + $0x4] sm:$0xf]
        %v195 = vld [vmem:[%s1 + $0x8] sm:$0xf]
        %v196 = vld [vmem:[%s1 + $0xc] sm:$0xf]
        %v197 = vld [vmem:[%s2] sm:$0x1]
        %v199 = vperm.slane %v197, 0
        %v205 = vunpack.c.l.b16 %v193
        %v206 = vunpack.c.l.b16 %v194
        %v207 = vunpack.c.l.b16 %v195
        %v208 = vunpack.c.l.b16 %v196
        %v209 = vpack.c.b16 %v206, %v205
        %v210 = vpack.c.b16 %v208, %v207
        %vm213 = vcmask 261120
        %v215 = vsel %vm213, %v192, 0
        %217 = vmatpush.bf16.msra.mxu0 0
        %218 = vmatpush.bf16.msra.mxu0 0
        %219 = vmatpush.bf16.msra.mxu0 0
        %220 = vmatpush.bf16.msra.mxu0 0
        %221 = vmatpush.bf16.msra.mxu0 0
        %222 = vmatpush.bf16.msra.mxu0 0
        %223 = vmatpush.bf16.msra.mxu0 %v210
        %224 = vmatpush.bf16.msra.mxu0 %v209
        %225 = vmatmul.bf16.gmra.mxu0 %v215
        %v226 = vpop.f32.mrf.mxu0
        %v227 = vadd.f32 %v199, %v226
        %v228 = vpop.f32.mrf.mxu0
        %229 = vdwg.mxu0
        %230 = vst.msk [vmem:[%s183] sm:$0xff] %vm213, %v227
        %s231 = sand.u32 %s109, 1
        %s232 = scalar_lea.sflag [#allocation3], %s231
        %s233 = sand.u32 %s109, 1
        %s234 = smul.addr %s233, 8
        %s235 = scalar_lea.vmem [#allocation2], %s234
        // Predicated region
        $region33: #{causal_self_attention.5} parent=31 // pred_check
          %p236 = pneg %p119
        $region34: #{causal_self_attention.5} parent=31 // pred_check_branch
          %238 = sbr.rel (%p236) target = $region36
        $region35: #{causal_self_attention.5} parent=31 // pred_region
          %240 = vsyncadd %s232, 0
          %s241 = sadd.s32 %s22, %s21
          %s242 = smul.addr %s241, 8
          %s243 = scalar_lea.hbm %s3, %s242
          %s245 = sshll.u32 %s235, 4
          %s246 = int_to_ptr.vmem [resolvable:$true] %s245
          %s247 = sshll.u32 %s243, 4
          %s248 = int_to_ptr.hbm [resolvable:$true] %s247
          %250 = dma.vmem_to_hbm [thread:$0]  %s246, 128, %s248, %s232
        $region36: #{causal_self_attention.5} parent=31 // pred_fallthru
          _
      $region32: #{causal_self_attention.5} parent=5 // pred_fallthru
        _
      %p251 = scmp.le.s32.totalorder 2, %s12
      // Predicated region
      $region37: #{causal_self_attention.5} parent=5 // pred_check
        %p252 = pneg %p251
      $region38: #{causal_self_attention.5} parent=5 // pred_check_branch
        %254 = sbr.rel (%p252) target = $region40
      $region39: #{causal_self_attention.5} parent=5 // pred_region
        %s255 = ssub.s32 %s12, 2
        // Predicated region
        $region41: #{causal_self_attention.5} parent=39 // pred_check
          %p256 = pneg %p125
        $region42: #{causal_self_attention.5} parent=39 // pred_check_branch
          %258 = sbr.rel (%p256) target = $region44
        $region43: #{causal_self_attention.5} parent=39 // pred_region
          %s259 = sand.u32 %s110, 1
          %s260 = scalar_lea.sflag [#allocation3], %s259
          %s261 = sand.u32 %s110, 1
          %s262 = smul.addr %s261, 8
          %s263 = scalar_lea.vmem [#allocation2], %s262
          %265 = dma.done %s260, 128
        $region44: #{causal_self_attention.5} parent=39 // pred_fallthru
          _
      $region40: #{causal_self_attention.5} parent=5 // pred_fallthru
        _
    $region6: #{causal_self_attention.5} parent=1 // loop_footer
      %s16 = sadd.s32 1, %s12
    $region7: #{causal_self_attention.5} parent=1 // loop_footer_branch
      %11 = sbr.rel target = $region3
    $region8: #{causal_self_attention.5} parent=1 // loop_exit
      _
    %266 = vsyncpa [#allocation3], 1
    %s267 = scalar_lea.sflag [#allocation3], 1
    %268 = vsyncpa %s267, 1

// kernel: causal_self_attention.3
$region0: #{causal_self_attention.3}
  #allocation0 [shape = 'u32[]', space=smem, size = 0x4, offset = 0x4, fixed_abs, tag = 'smem constant byte address 0x4 - core index']
  #allocation1 [shape = 'u32[72,128]{1,0:T(1,128)}', space=vmem, size = 0x9000, scoped, tag = 'internal scratch']
  %s0 = inlined_call_operand.vmem [shape: bf16[2,8,32], index: 0, kind: input, shape index: {}]
  %s1 = inlined_call_operand.vmem [shape: bf16[32,32], index: 1, kind: input, shape index: {}]
  %s2 = inlined_call_operand.vmem [shape: bf16[32,16], index: 2, kind: input, shape index: {}]
  %s3 = inlined_call_operand.vmem [shape: bf16[32,16], index: 3, kind: input, shape index: {}]
  %s4 = inlined_call_operand.vmem [shape: f32[1,32], index: 4, kind: input, shape index: {}]
  %s5 = inlined_call_operand.vmem [shape: f32[1,16], index: 5, kind: input, shape index: {}]
  %s6 = inlined_call_operand.vmem [shape: f32[1,16], index: 6, kind: input, shape index: {}]
  %s7 = inlined_call_operand.vmem [shape: bf16[2,8,32], index: 7, kind: output, shape index: {0}]
  %s8 = inlined_call_operand.vmem [shape: bf16[2,2,8,8], index: 8, kind: output, shape index: {1}]
  %s9 = inlined_call_operand.vmem [shape: bf16[2,2,8,8], index: 9, kind: output, shape index: {2}]
  %10 = xla_tuple %s7, %s8, %s9
  %s11 = sld [smem:[#allocation0]]
  $region77: #{causal_self_attention.3} parent=0
    _
  %s13 = ssub.s32 1, %s11
  %s14 = scalar_select 0, %s13, %s11
  loop: start=0, step=1, limit=4
  $region2: #{causal_self_attention.3} parent=0 // loop_pre_header
    _
  $region3: #{causal_self_attention.3} parent=0 // loop_header
    %s16 = sphi 0, %s20
    %p17 = scmp.ge.s32.totalorder %s16, 4
    %s23 = sphi 0, %s35
    %s24 = sphi 0, %s31
    %s25 = sphi 0, %s23
    %s26 = sphi 0, %s24
    %s27 = sphi 0, %s25
    %s28 = sphi 0, %s26
    %s40 = sphi 0, %s42
    %s43 = sphi 0, %s40
    %s44 = sphi 0, %s43
    %s60 = sphi 0, %s44
    %s64 = sphi 0, %s64
    %s66 = sphi 0, %s64
    %s67 = sphi 0, %s66
    %s81 = sphi 0, %s67
    %s85 = sphi 0, %s85
    %s87 = sphi 0, %s85
    %s88 = sphi 0, %s87
    %s102 = sphi 0, %s88
    %s106 = sphi 0, %s106
    %s108 = sphi 0, %s106
    %s109 = sphi 0, %s108
    %s123 = sphi 0, %s109
    %s127 = sphi 0, %s127
    %s129 = sphi 0, %s127
    %s130 = sphi 0, %s129
    %s144 = sphi 0, %s130
    %s148 = sphi 0, %s148
    %s150 = sphi 0, %s148
    %s151 = sphi 0, %s150
    %s165 = sphi 0, %s151
    %s169 = sphi 0, %s169
    %s171 = sphi 0, %s169
    %s172 = sphi 0, %s171
    %s186 = sphi 0, %s172
    %s194 = sphi 0, %s196
    %s197 = sphi 0, %s194
    %s198 = sphi 0, %s197
    %s214 = sphi 0, %s198
    %s222 = sphi 0, %s224
    %s225 = sphi 0, %s222
    %s226 = sphi 0, %s225
    %s242 = sphi 0, %s226
    %s250 = sphi 0, %s252
    %s253 = sphi 0, %s250
    %s254 = sphi 0, %s253
    %s270 = sphi 0, %s254
  $region4: #{causal_self_attention.3} parent=0 // loop_header_branch
    %19 = sbr.rel (%p17) target = $region8
  $region5: #{causal_self_attention.3} parent=0 // loop_body
    %s21 = ssub.s32 %s16, 1
    %s22 = ssub.s32 %s16, 2
    %s29 = sadd.s32 1, %s24
    %p30 = scmp.ge.s32.totalorder %s29, 1
    %s31 = scalar_select %p30, 0, %s29
    %s32 = sadd.s32 1, %s23
    %s33 = scalar_select %p30, %s32, %s23
    %p34 = scmp.ge.s32.totalorder %s33, 2
    %s35 = scalar_select %p34, 0, %s33
    %s36 = ssub.s32 %s23, %s35
    %s37 = ssub.s32 %s24, %s31
    %s38 = sor.u32 %s36, %s37
    %p39 = scmp.eq.s32.totalorder %s38, 0
    %s41 = sadd.s32 %s40, 1
    %s42 = scalar_select %p39, %s40, %s41
    %p45 = pneg %p39
    %p46 = scmp.eq.s32.totalorder %s16, 1
    %p47 = por %p45, %p46
    %p48 = scmp.ne.s32.totalorder %s40, %s43
    %p49 = scmp.eq.s32.totalorder %s16, 0
    %p50 = por %p48, %p49
    %p51 = scmp.ne.s32.totalorder %s40, %s43
    %p52 = scmp.eq.s32.totalorder %s21, 1
    %p53 = por %p51, %p52
    %p54 = scmp.ne.s32.totalorder %s43, %s44
    %p55 = scmp.eq.s32.totalorder %s21, 0
    %p56 = por %p54, %p55
    %p57 = scmp.ne.s32.totalorder %s43, %s44
    %p58 = scmp.eq.s32.totalorder %s22, 1
    %p59 = por %p57, %p58
    %p61 = scmp.ne.s32.totalorder %s44, %s60
    %p62 = scmp.eq.s32.totalorder %s22, 0
    %p63 = por %p61, %p62
    %s65 = sadd.s32 %s64, 1
    %p68 = scmp.eq.s32.totalorder %s16, 1
    %p69 = scmp.ne.s32.totalorder %s64, %s66
    %p70 = scmp.eq.s32.totalorder %s16, 0
    %p71 = por %p69, %p70
    %p72 = scmp.ne.s32.totalorder %s64, %s66
    %p73 = scmp.eq.s32.totalorder %s21, 1
    %p74 = por %p72, %p73
    %p75 = scmp.ne.s32.totalorder %s66, %s67
    %p76 = scmp.eq.s32.totalorder %s21, 0
    %p77 = por %p75, %p76
    %p78 = scmp.ne.s32.totalorder %s66, %s67
    %p79 = scmp.eq.s32.totalorder %s22, 1
    %p80 = por %p78, %p79
    %p82 = scmp.ne.s32.totalorder %s67, %s81
    %p83 = scmp.eq.s32.totalorder %s22, 0
    %p84 = por %p82, %p83
    %s86 = sadd.s32 %s85, 1
    %p89 = scmp.eq.s32.totalorder %s16, 1
    %p90 = scmp.ne.s32.totalorder %s85, %s87
    %p91 = scmp.eq.s32.totalorder %s16, 0
    %p92 = por %p90, %p91
    %p93 = scmp.ne.s32.totalorder %s85, %s87
    %p94 = scmp.eq.s32.totalorder %s21, 1
    %p95 = por %p93, %p94
    %p96 = scmp.ne.s32.totalorder %s87, %s88
    %p97 = scmp.eq.s32.totalorder %s21, 0
    %p98 = por %p96, %p97
    %p99 = scmp.ne.s32.totalorder %s87, %s88
    %p100 = scmp.eq.s32.totalorder %s22, 1
    %p101 = por %p99, %p100
    %p103 = scmp.ne.s32.totalorder %s88, %s102
    %p104 = scmp.eq.s32.totalorder %s22, 0
    %p105 = por %p103, %p104
    %s107 = sadd.s32 %s106, 1
    %p110 = scmp.eq.s32.totalorder %s16, 1
    %p111 = scmp.ne.s32.totalorder %s106, %s108
    %p112 = scmp.eq.s32.totalorder %s16, 0
    %p113 = por %p111, %p112
    %p114 = scmp.ne.s32.totalorder %s106, %s108
    %p115 = scmp.eq.s32.totalorder %s21, 1
    %p116 = por %p114, %p115
    %p117 = scmp.ne.s32.totalorder %s108, %s109
    %p118 = scmp.eq.s32.totalorder %s21, 0
    %p119 = por %p117, %p118
    %p120 = scmp.ne.s32.totalorder %s108, %s109
    %p121 = scmp.eq.s32.totalorder %s22, 1
    %p122 = por %p120, %p121
    %p124 = scmp.ne.s32.totalorder %s109, %s123
    %p125 = scmp.eq.s32.totalorder %s22, 0
    %p126 = por %p124, %p125
    %s128 = sadd.s32 %s127, 1
    %p131 = scmp.eq.s32.totalorder %s16, 1
    %p132 = scmp.ne.s32.totalorder %s127, %s129
    %p133 = scmp.eq.s32.totalorder %s16, 0
    %p134 = por %p132, %p133
    %p135 = scmp.ne.s32.totalorder %s127, %s129
    %p136 = scmp.eq.s32.totalorder %s21, 1
    %p137 = por %p135, %p136
    %p138 = scmp.ne.s32.totalorder %s129, %s130
    %p139 = scmp.eq.s32.totalorder %s21, 0
    %p140 = por %p138, %p139
    %p141 = scmp.ne.s32.totalorder %s129, %s130
    %p142 = scmp.eq.s32.totalorder %s22, 1
    %p143 = por %p141, %p142
    %p145 = scmp.ne.s32.totalorder %s130, %s144
    %p146 = scmp.eq.s32.totalorder %s22, 0
    %p147 = por %p145, %p146
    %s149 = sadd.s32 %s148, 1
    %p152 = scmp.eq.s32.totalorder %s16, 1
    %p153 = scmp.ne.s32.totalorder %s148, %s150
    %p154 = scmp.eq.s32.totalorder %s16, 0
    %p155 = por %p153, %p154
    %p156 = scmp.ne.s32.totalorder %s148, %s150
    %p157 = scmp.eq.s32.totalorder %s21, 1
    %p158 = por %p156, %p157
    %p159 = scmp.ne.s32.totalorder %s150, %s151
    %p160 = scmp.eq.s32.totalorder %s21, 0
    %p161 = por %p159, %p160
    %p162 = scmp.ne.s32.totalorder %s150, %s151
    %p163 = scmp.eq.s32.totalorder %s22, 1
    %p164 = por %p162, %p163
    %p166 = scmp.ne.s32.totalorder %s151, %s165
    %p167 = scmp.eq.s32.totalorder %s22, 0
    %p168 = por %p166, %p167
    %s170 = sadd.s32 %s169, 1
    %p173 = scmp.eq.s32.totalorder %s16, 1
    %p174 = scmp.ne.s32.totalorder %s169, %s171
    %p175 = scmp.eq.s32.totalorder %s16, 0
    %p176 = por %p174, %p175
    %p177 = scmp.ne.s32.totalorder %s169, %s171
    %p178 = scmp.eq.s32.totalorder %s21, 1
    %p179 = por %p177, %p178
    %p180 = scmp.ne.s32.totalorder %s171, %s172
    %p181 = scmp.eq.s32.totalorder %s21, 0
    %p182 = por %p180, %p181
    %p183 = scmp.ne.s32.totalorder %s171, %s172
    %p184 = scmp.eq.s32.totalorder %s22, 1
    %p185 = por %p183, %p184
    %p187 = scmp.ne.s32.totalorder %s172, %s186
    %p188 = scmp.eq.s32.totalorder %s22, 0
    %p189 = por %p187, %p188
    %s190 = ssub.s32 %s23, %s35
    %s191 = ssub.s32 %s24, %s31
    %s192 = sor.u32 %s190, %s191
    %p193 = scmp.eq.s32.totalorder %s192, 0
    %s195 = sadd.s32 %s194, 1
    %s196 = scalar_select %p193, %s194, %s195
    %p199 = pneg %p193
    %p200 = scmp.eq.s32.totalorder %s16, 1
    %p201 = por %p199, %p200
    %p202 = scmp.ne.s32.totalorder %s194, %s197
    %p203 = scmp.eq.s32.totalorder %s16, 0
    %p204 = por %p202, %p203
    %p205 = scmp.ne.s32.totalorder %s194, %s197
    %p206 = scmp.eq.s32.totalorder %s21, 1
    %p207 = por %p205, %p206
    %p208 = scmp.ne.s32.totalorder %s197, %s198
    %p209 = scmp.eq.s32.totalorder %s21, 0
    %p210 = por %p208, %p209
    %p211 = scmp.ne.s32.totalorder %s197, %s198
    %p212 = scmp.eq.s32.totalorder %s22, 1
    %p213 = por %p211, %p212
    %p215 = scmp.ne.s32.totalorder %s198, %s214
    %p216 = scmp.eq.s32.totalorder %s22, 0
    %p217 = por %p215, %p216
    %s218 = ssub.s32 %s23, %s35
    %s219 = ssub.s32 %s24, %s31
    %s220 = sor.u32 %s218, %s219
    %p221 = scmp.eq.s32.totalorder %s220, 0
    %s223 = sadd.s32 %s222, 1
    %s224 = scalar_select %p221, %s222, %s223
    %p227 = pneg %p221
    %p228 = scmp.eq.s32.totalorder %s16, 1
    %p229 = por %p227, %p228
    %p230 = scmp.ne.s32.totalorder %s222, %s225
    %p231 = scmp.eq.s32.totalorder %s16, 0
    %p232 = por %p230, %p231
    %p233 = scmp.ne.s32.totalorder %s222, %s225
    %p234 = scmp.eq.s32.totalorder %s21, 1
    %p235 = por %p233, %p234
    %p236 = scmp.ne.s32.totalorder %s225, %s226
    %p237 = scmp.eq.s32.totalorder %s21, 0
    %p238 = por %p236, %p237
    %p239 = scmp.ne.s32.totalorder %s225, %s226
    %p240 = scmp.eq.s32.totalorder %s22, 1
    %p241 = por %p239, %p240
    %p243 = scmp.ne.s32.totalorder %s226, %s242
    %p244 = scmp.eq.s32.totalorder %s22, 0
    %p245 = por %p243, %p244
    %s246 = ssub.s32 %s23, %s35
    %s247 = ssub.s32 %s24, %s31
    %s248 = sor.u32 %s246, %s247
    %p249 = scmp.eq.s32.totalorder %s248, 0
    %s251 = sadd.s32 %s250, 1
    %s252 = scalar_select %p249, %s250, %s251
    %p255 = pneg %p249
    %p256 = scmp.eq.s32.totalorder %s16, 1
    %p257 = por %p255, %p256
    %p258 = scmp.ne.s32.totalorder %s250, %s253
    %p259 = scmp.eq.s32.totalorder %s16, 0
    %p260 = por %p258, %p259
    %p261 = scmp.ne.s32.totalorder %s250, %s253
    %p262 = scmp.eq.s32.totalorder %s21, 1
    %p263 = por %p261, %p262
    %p264 = scmp.ne.s32.totalorder %s253, %s254
    %p265 = scmp.eq.s32.totalorder %s21, 0
    %p266 = por %p264, %p265
    %p267 = scmp.ne.s32.totalorder %s253, %s254
    %p268 = scmp.eq.s32.totalorder %s22, 1
    %p269 = por %p267, %p268
    %p271 = scmp.ne.s32.totalorder %s254, %s270
    %p272 = scmp.eq.s32.totalorder %s22, 0
    %p273 = por %p271, %p272
    %p274 = scmp.le.s32.totalorder 1, %s16
    %p275 = scmp.lt.s32.totalorder %s16, 3
    %p276 = pnand %p274, %p275
    %p277 = pneg %p276
    // Predicated region
    $region9: #{causal_self_attention.3} parent=5 // pred_check
      _
    $region10: #{causal_self_attention.3} parent=5 // pred_check_branch
      %279 = sbr.rel (%p276) target = $region12
    $region11: #{causal_self_attention.3} parent=5 // pred_region
      %s280 = ssub.s32 %s16, 1
      // Predicated region
      $region13: #{causal_self_attention.3} parent=11 // pred_check
        %p281 = pneg %p77
      $region14: #{causal_self_attention.3} parent=11 // pred_check_branch
        %283 = sbr.rel (%p281) target = $region16
      $region15: #{causal_self_attention.3} parent=11 // pred_region
        _
      $region16: #{causal_self_attention.3} parent=11 // pred_fallthru
        _
      // Predicated region
      $region17: #{causal_self_attention.3} parent=11 // pred_check
        %p284 = pneg %p98
      $region18: #{causal_self_attention.3} parent=11 // pred_check_branch
        %286 = sbr.rel (%p284) target = $region20
      $region19: #{causal_self_attention.3} parent=11 // pred_region
        _
      $region20: #{causal_self_attention.3} parent=11 // pred_fallthru
        _
      // Predicated region
      $region21: #{causal_self_attention.3} parent=11 // pred_check
        %p287 = pneg %p119
      $region22: #{causal_self_attention.3} parent=11 // pred_check_branch
        %289 = sbr.rel (%p287) target = $region24
      $region23: #{causal_self_attention.3} parent=11 // pred_region
        _
      $region24: #{causal_self_attention.3} parent=11 // pred_fallthru
        _
      // Predicated region
      $region25: #{causal_self_attention.3} parent=11 // pred_check
        %p290 = pneg %p140
      $region26: #{causal_self_attention.3} parent=11 // pred_check_branch
        %292 = sbr.rel (%p290) target = $region28
      $region27: #{causal_self_attention.3} parent=11 // pred_region
        _
      $region28: #{causal_self_attention.3} parent=11 // pred_fallthru
        _
      // Predicated region
      $region29: #{causal_self_attention.3} parent=11 // pred_check
        %p293 = pneg %p161
      $region30: #{causal_self_attention.3} parent=11 // pred_check_branch
        %295 = sbr.rel (%p293) target = $region32
      $region31: #{causal_self_attention.3} parent=11 // pred_region
        _
      $region32: #{causal_self_attention.3} parent=11 // pred_fallthru
        _
      // Predicated region
      $region33: #{causal_self_attention.3} parent=11 // pred_check
        %p296 = pneg %p182
      $region34: #{causal_self_attention.3} parent=11 // pred_check_branch
        %298 = sbr.rel (%p296) target = $region36
      $region35: #{causal_self_attention.3} parent=11 // pred_region
        _
      $region36: #{causal_self_attention.3} parent=11 // pred_fallthru
        _
    $region12: #{causal_self_attention.3} parent=5 // pred_fallthru
      _
    %p299 = scmp.lt.s32.totalorder %s16, 2
    // Predicated region
    $region37: #{causal_self_attention.3} parent=5 // pred_check
      %p300 = pneg %p299
    $region38: #{causal_self_attention.3} parent=5 // pred_check_branch
      %302 = sbr.rel (%p300) target = $region40
    $region39: #{causal_self_attention.3} parent=5 // pred_region
      // Predicated region
      $region41: #{causal_self_attention.3} parent=39 // pred_check
        %p303 = pneg %p50
      $region42: #{causal_self_attention.3} parent=39 // pred_check_branch
        %305 = sbr.rel (%p303) target = $region44
      $region43: #{causal_self_attention.3} parent=39 // pred_region
        %p306 = scmp.lt.s32.totalorder %s23, 1
        %s307 = scalar_select %p306, %s23, 1
        %p308 = scmp.lt.s32.totalorder %s24, 0
        %s309 = scalar_select %p308, %s24, 0
        %s310 = sadd.s32 %s309, %s307
        %s311 = smul.addr %s310, 4
        %s312 = scalar_lea.vmem %s0, %s311
      $region44: #{causal_self_attention.3} parent=39 // pred_fallthru
        _
    $region40: #{causal_self_attention.3} parent=5 // pred_fallthru
      _
    %p313 = scmp.le.s32.totalorder 1, %s16
    %p314 = scmp.lt.s32.totalorder %s16, 3
    %p315 = pnand %p313, %p314
    %p316 = pneg %p315
    // Predicated region
    $region45: #{causal_self_attention.3} parent=5 // pred_check
      _
    $region46: #{causal_self_attention.3} parent=5 // pred_check_branch
      %318 = sbr.rel (%p315) target = $region48
    $region47: #{causal_self_attention.3} parent=5 // pred_region
      %s319 = ssub.s32 %s16, 1
      %p320 = scmp.lt.s32.totalorder %s25, 1
      %s321 = scalar_select %p320, %s25, 1
      %p322 = scmp.lt.s32.totalorder %s26, 0
      %s323 = scalar_select %p322, %s26, 0
      %s324 = sadd.s32 %s323, %s321
      %s325 = smul.addr %s324, 4
      %s326 = scalar_lea.vmem %s0, %s325
      %p327 = pneg %p56
      %p328 = pneg %p53
      %p329 = pneg %p77
      %p330 = pneg %p74
      %p331 = pneg %p98
      %p332 = pneg %p95
      %p333 = pneg %p119
      %p334 = pneg %p116
      %p335 = pneg %p140
      %p336 = pneg %p137
      %p337 = pneg %p161
      %p338 = pneg %p158
      %p339 = pneg %p182
      %p340 = pneg %p179
      %p341 = pneg %p210
      %p342 = pneg %p207
      %p343 = scmp.lt.s32.totalorder %s25, 1
      %s344 = scalar_select %p343, %s25, 1
      %p345 = scmp.lt.s32.totalorder %s26, 0
      %s346 = scalar_select %p345, %s26, 0
      %s347 = sadd.s32 %s346, %s344
      %s348 = smul.addr %s347, 4
      %s349 = scalar_lea.vmem %s7, %s348
      %p350 = pneg %p238
      %p351 = pneg %p235
      %p352 = scmp.lt.s32.totalorder %s25, 1
      %s353 = scalar_select %p352, %s25, 1
      %p354 = scmp.lt.s32.totalorder %s26, 0
      %s355 = scalar_select %p354, %s26, 0
      %s356 = smul.addr %s353, 2
      %s357 = sadd.s32 %s355, %s356
      %s358 = smul.addr %s357, 4
      %s359 = scalar_lea.vmem %s8, %s358
      %p360 = pneg %p266
      %p361 = pneg %p263
      %p362 = scmp.lt.s32.totalorder %s25, 1
      %s363 = scalar_select %p362, %s25, 1
      %p364 = scmp.lt.s32.totalorder %s26, 0
      %s365 = scalar_select %p364, %s26, 0
      %s366 = smul.addr %s363, 2
      %s367 = sadd.s32 %s365, %s366
      %s368 = smul.addr %s367, 4
      %s369 = scalar_lea.vmem %s9, %s368
      %p370 = scmp.lt.s32.totalorder %s25, 1
      %s371 = scalar_select %p370, %s25, 1
      %p372 = scmp.lt.s32.totalorder %s26, 0
      %s373 = scalar_select %p372, %s26, 0
      %s374 = sadd.s32 %s373, %s371
      %s375 = smul.addr %s374, 4
      %s376 = scalar_lea.vmem %s0, %s375
      %p377 = scmp.lt.s32.totalorder %s25, 1
      %s378 = scalar_select %p377, %s25, 1
      %p379 = scmp.lt.s32.totalorder %s26, 0
      %s380 = scalar_select %p379, %s26, 0
      %s381 = sadd.s32 %s380, %s378
      %s382 = smul.addr %s381, 4
      %s383 = scalar_lea.vmem %s7, %s382
      %p384 = scmp.lt.s32.totalorder %s25, 1
      %s385 = scalar_select %p384, %s25, 1
      %p386 = scmp.lt.s32.totalorder %s26, 0
      %s387 = scalar_select %p386, %s26, 0
      %s388 = smul.addr %s385, 2
      %s389 = sadd.s32 %s387, %s388
      %s390 = smul.addr %s389, 4
      %s391 = scalar_lea.vmem %s8, %s390
      %p392 = scmp.lt.s32.totalorder %s25, 1
      %s393 = scalar_select %p392, %s25, 1
      %p394 = scmp.lt.s32.totalorder %s26, 0
      %s395 = scalar_select %p394, %s26, 0
      %s396 = smul.addr %s393, 2
      %s397 = sadd.s32 %s395, %s396
      %s398 = smul.addr %s397, 4
      %s399 = scalar_lea.vmem %s9, %s398
      %v401 = vld [vmem:[%s376] sm:$0xf]
      %v402 = vld [vmem:[%s1] sm:$0xf]
      %v403 = vld [vmem:[%s1 + $0x4] sm:$0xf]
      %v404 = vld [vmem:[%s1 + $0x8] sm:$0xf]
      %v405 = vld [vmem:[%s1 + $0xc] sm:$0xf]
      %v406 = vld [vmem:[%s4] sm:$0x1]
      %v408 = vperm.slane %v406, 0
      %v414 = vunpack.c.l.b16 %v402
      %v415 = vunpack.c.l.b16 %v403
      %v416 = vunpack.c.l.b16 %v404
      %v417 = vunpack.c.l.b16 %v405
      %v418 = vpack.c.b16 %v415, %v414
      %v419 = vpack.c.b16 %v417, %v416
      %vm422 = vcmask 261120
      %v424 = vsel %vm422, %v401, 0
      %426 = vmatpush.bf16.msra.mxu0 0
      %427 = vmatpush.bf16.msra.mxu0 0
      %428 = vmatpush.bf16.msra.mxu0 0
      %429 = vmatpush.bf16.msra.mxu0 0
      %430 = vmatpush.bf16.msra.mxu0 0
      %431 = vmatpush.bf16.msra.mxu0 0
      %432 = vmatpush.bf16.msra.mxu0 %v419
      %433 = vmatpush.bf16.msra.mxu0 %v418
      %434 = vmatmul.bf16.gmra.mxu0 %v424
      %v435 = vpop.f32.mrf.mxu0
      %v436 = vadd.f32 %v408, %v435
      %v437 = vpop.f32.mrf.mxu0
      %438 = vdwg.mxu0
      %v439 = vpack.c.bf16 %v436, %v436
      %vm440 = vcmask 257024
      %441 = vst.msk [vmem:[%s383] sm:$0xf] %vm440, %v439
      %v442 = vld [vmem:[%s2] sm:$0xf]
      %v443 = vld [vmem:[%s2 + $0x4] sm:$0xf]
      %v444 = vld [vmem:[%s2 + $0x8] sm:$0xf]
      %v445 = vld [vmem:[%s2 + $0xc] sm:$0xf]
      %v446 = vld [vmem:[%s5] sm:$0x1]
      %v448 = vperm.slane %v446, 0
      %v454 = vunpack.c.l.b16 %v442
      %v455 = vunpack.c.l.b16 %v443
      %v456 = vunpack.c.l.b16 %v444
      %v457 = vunpack.c.l.b16 %v445
      %v458 = vpack.c.b16 %v455, %v454
      %v459 = vpack.c.b16 %v457, %v456
      %462 = vmatpush.bf16.msra.mxu0 0
      %463 = vmatpush.bf16.msra.mxu0 0
      %464 = vmatpush.bf16.msra.mxu0 0
      %465 = vmatpush.bf16.msra.mxu0 0
      %466 = vmatpush.bf16.msra.mxu0 0
      %467 = vmatpush.bf16.msra.mxu0 0
      %468 = vmatpush.bf16.msra.mxu0 %v459
      %469 = vmatpush.bf16.msra.mxu0 %v458
      %470 = vmatmul.bf16.gmra.mxu0 %v424
      %v471 = vpop.f32.mrf.mxu0
      %v472 = vadd.f32 %v448, %v471
      %v473 = vpop.f32.mrf.mxu0
      %474 = vdwg.mxu0
      %v475 = vld [vmem:[%s3] sm:$0xf]
      %v476 = vld [vmem:[%s3 + $0x4] sm:$0xf]
      %v477 = vld [vmem:[%s3 + $0x8] sm:$0xf]
      %v478 = vld [vmem:[%s3 + $0xc] sm:$0xf]
      %v479 = vld [vmem:[%s6] sm:$0x1]
      %v481 = vperm.slane %v479, 0
      %v487 = vunpack.c.l.b16 %v475
      %v488 = vunpack.c.l.b16 %v476
      %v489 = vunpack.c.l.b16 %v477
      %v490 = vunpack.c.l.b16 %v478
      %v491 = vpack.c.b16 %v488, %v487
      %v492 = vpack.c.b16 %v490, %v489
      %495 = vmatpush.bf16.msra.mxu0 0
      %496 = vmatpush.bf16.msra.mxu0 0
      %497 = vmatpush.bf16.msra.mxu0 0
      %498 = vmatpush.bf16.msra.mxu0 0
      %499 = vmatpush.bf16.msra.mxu0 0
      %500 = vmatpush.bf16.msra.mxu0 0
      %501 = vmatpush.bf16.msra.mxu0 %v492
      %502 = vmatpush.bf16.msra.mxu0 %v491
      %503 = vmatmul.bf16.gmra.mxu0 %v424
      %v504 = vpop.f32.mrf.mxu0
      %v505 = vadd.f32 %v481, %v504
      %v506 = vpop.f32.mrf.mxu0
      %507 = vdwg.mxu0
      %v508 = vpack.c.bf16 %v472, %v472
      %vm509 = vcmask 60416
      %510 = vst.msk [vmem:[%s391] sm:$0xf] %vm509, %v508
      %v511 = vpack.c.bf16 %v505, %v505
      %512 = vst.msk [vmem:[%s399] sm:$0xf] %vm509, %v511
      %514 = vrot.lane.b32.xlu0 %v508, 120
      %v515 = vpop.permute.xlu0 %514
      %s517 = scalar_lea.vmem %s391, 4
      %518 = vst.msk [vmem:[%s517] sm:$0xf] %vm509, %v515
      %520 = vrot.lane.b32.xlu0 %v511, 120
      %v521 = vpop.permute.xlu0 %520
      %s523 = scalar_lea.vmem %s399, 4
      %524 = vst.msk [vmem:[%s523] sm:$0xf] %vm509, %v521
      %p525 = scmp.lt.s32.totalorder %s25, 1
      %s526 = scalar_select %p525, %s25, 1
      %p527 = scmp.lt.s32.totalorder %s26, 0
      %s528 = scalar_select %p527, %s26, 0
      %s529 = sadd.s32 %s528, %s526
      %s530 = smul.addr %s529, 4
      %s531 = scalar_lea.vmem %s7, %s530
      %p532 = scmp.lt.s32.totalorder %s25, 1
      %s533 = scalar_select %p532, %s25, 1
      %p534 = scmp.lt.s32.totalorder %s26, 0
      %s535 = scalar_select %p534, %s26, 0
      %s536 = smul.addr %s533, 2
      %s537 = sadd.s32 %s535, %s536
      %s538 = smul.addr %s537, 4
      %s539 = scalar_lea.vmem %s8, %s538
      %p540 = scmp.lt.s32.totalorder %s25, 1
      %s541 = scalar_select %p540, %s25, 1
      %p542 = scmp.lt.s32.totalorder %s26, 0
      %s543 = scalar_select %p542, %s26, 0
      %s544 = smul.addr %s541, 2
      %s545 = sadd.s32 %s543, %s544
      %s546 = smul.addr %s545, 4
      %s547 = scalar_lea.vmem %s9, %s546
      // Predicated region
      $region49: #{causal_self_attention.3} parent=47 // pred_check
        %p548 = pneg %p207
      $region50: #{causal_self_attention.3} parent=47 // pred_check_branch
        %550 = sbr.rel (%p548) target = $region52
      $region51: #{causal_self_attention.3} parent=47 // pred_region
        _
      $region52: #{causal_self_attention.3} parent=47 // pred_fallthru
        _
      // Predicated region
      $region53: #{causal_self_attention.3} parent=47 // pred_check
        %p551 = pneg %p235
      $region54: #{causal_self_attention.3} parent=47 // pred_check_branch
        %553 = sbr.rel (%p551) target = $region56
      $region55: #{causal_self_attention.3} parent=47 // pred_region
        _
      $region56: #{causal_self_attention.3} parent=47 // pred_fallthru
        _
      // Predicated region
      $region57: #{causal_self_attention.3} parent=47 // pred_check
        %p554 = pneg %p263
      $region58: #{causal_self_attention.3} parent=47 // pred_check_branch
        %556 = sbr.rel (%p554) target = $region60
      $region59: #{causal_self_attention.3} parent=47 // pred_region
        _
      $region60: #{causal_self_attention.3} parent=47 // pred_fallthru
        _
    $region48: #{causal_self_attention.3} parent=5 // pred_fallthru
      _
    %p557 = scmp.le.s32.totalorder 2, %s16
    // Predicated region
    $region61: #{causal_self_attention.3} parent=5 // pred_check
      %p558 = pneg %p557
    $region62: #{causal_self_attention.3} parent=5 // pred_check_branch
      %560 = sbr.rel (%p558) target = $region64
    $region63: #{causal_self_attention.3} parent=5 // pred_region
      %s561 = ssub.s32 %s16, 2
      // Predicated region
      $region65: #{causal_self_attention.3} parent=63 // pred_check
        %p562 = pneg %p213
      $region66: #{causal_self_attention.3} parent=63 // pred_check_branch
        %564 = sbr.rel (%p562) target = $region68
      $region67: #{causal_self_attention.3} parent=63 // pred_region
        %p565 = scmp.lt.s32.totalorder %s27, 1
        %s566 = scalar_select %p565, %s27, 1
        %p567 = scmp.lt.s32.totalorder %s28, 0
        %s568 = scalar_select %p567, %s28, 0
        %s569 = sadd.s32 %s568, %s566
        %s570 = smul.addr %s569, 4
        %s571 = scalar_lea.vmem %s7, %s570
      $region68: #{causal_self_attention.3} parent=63 // pred_fallthru
        _
      // Predicated region
      $region69: #{causal_self_attention.3} parent=63 // pred_check
        %p572 = pneg %p241
      $region70: #{causal_self_attention.3} parent=63 // pred_check_branch
        %574 = sbr.rel (%p572) target = $region72
      $region71: #{causal_self_attention.3} parent=63 // pred_region
        %p575 = scmp.lt.s32.totalorder %s27, 1
        %s576 = scalar_select %p575, %s27, 1
        %p577 = scmp.lt.s32.totalorder %s28, 0
        %s578 = scalar_select %p577, %s28, 0
        %s579 = smul.addr %s576, 2
        %s580 = sadd.s32 %s578, %s579
        %s581 = smul.addr %s580, 4
        %s582 = scalar_lea.vmem %s8, %s581
      $region72: #{causal_self_attention.3} parent=63 // pred_fallthru
        _
      // Predicated region
      $region73: #{causal_self_attention.3} parent=63 // pred_check
        %p583 = pneg %p269
      $region74: #{causal_self_attention.3} parent=63 // pred_check_branch
        %585 = sbr.rel (%p583) target = $region76
      $region75: #{causal_self_attention.3} parent=63 // pred_region
        %p586 = scmp.lt.s32.totalorder %s27, 1
        %s587 = scalar_select %p586, %s27, 1
        %p588 = scmp.lt.s32.totalorder %s28, 0
        %s589 = scalar_select %p588, %s28, 0
        %s590 = smul.addr %s587, 2
        %s591 = sadd.s32 %s589, %s590
        %s592 = smul.addr %s591, 4
        %s593 = scalar_lea.vmem %s9, %s592
      $region76: #{causal_self_attention.3} parent=63 // pred_fallthru
        _
    $region64: #{causal_self_attention.3} parent=5 // pred_fallthru
      _
  $region6: #{causal_self_attention.3} parent=0 // loop_footer
    %s20 = sadd.s32 1, %s16
  $region7: #{causal_self_attention.3} parent=0 // loop_footer_branch
    %15 = sbr.rel target = $region3
  $region8: #{causal_self_attention.3} parent=0 // loop_exit
    _

// kernel: causal_self_attention.4
$region0: #{causal_self_attention.4}
  #allocation0 [shape = 'u32[]', space=smem, size = 0x4, offset = 0x4, fixed_abs, tag = 'smem constant byte address 0x4 - core index']
  #allocation1 [shape = 'u32[72,128]{1,0:T(1,128)}', space=vmem, size = 0x9000, scoped, tag = 'internal scratch']
  #allocation2 [shape = 'bf16[2,8,8]{2,1,0:T(8,128)(2,1)}', space=vmem, size = 0x1000, scoped, tag = 'scratch operand']
  #allocation3 [shape = 'f32[2,8,1]{2,1,0:T(8,128)}', space=vmem, size = 0x2000, scoped, tag = 'scratch operand']
  #allocation4 [shape = 'f32[2,8,1]{2,1,0:T(8,128)}', space=vmem, size = 0x2000, scoped, tag = 'scratch operand']
  #allocation5 [shape = 'f32[2,8,8]{2,1,0:T(8,128)}', space=vmem, size = 0x2000, scoped, tag = 'scratch operand']
  #allocation6 [shape = 's32[1]{0}', space=sflag, size = 0x4, scoped, tag = 'scoped memory for causal_self_attention.4']
  #allocation7 [shape = 's32[1]{0:T(128)S(6)}', space=smem, size = 0x200, scoped, tag = 'prefetched SMEM operand 0']
  #allocation8 [shape = 's32[1]{0:T(128)S(6)}', space=smem, size = 0x200, scoped, tag = 'prefetched SMEM operand 1']
  %s0 = inlined_call_operand.<no memory space> [shape: s32[1], index: 0, kind: input, shape index: {}, may-alias: {0,1}]
  %s1 = inlined_call_operand.<no memory space> [shape: s32[1], index: 1, kind: input, shape index: {}, may-alias: {0,1}]
  %s2 = inlined_call_operand.vmem [shape: bf16[2,8,2,2,8], index: 2, kind: input, shape index: {}]
  %s3 = inlined_call_operand.vmem [shape: bf16[2,2,8,8], index: 3, kind: input, shape index: {}]
  %s4 = inlined_call_operand.vmem [shape: bf16[2,2,8,8], index: 4, kind: input, shape index: {}]
  %s5 = inlined_call_operand.vmem [shape: bf16[2,8,2,2,8], index: 5, kind: output, shape index: {}]
  %s6 = sld [smem:[#allocation0]]
  $region135: #{causal_self_attention.4} parent=0
    _
  %s8 = ssub.s32 1, %s6
  %s9 = scalar_select 0, %s8, %s6
  %10 = sst [smem:[#allocation7]] %s0
  %11 = sst [smem:[#allocation8]] %s1
  $region1: #{causal_self_attention.4} parent=0
    #allocation9 [shape = 'u8[8192]{0}', space=vmem, size = 0x2000, scoped, tag = 'input window, operand 2']
    #allocation10 [shape = 'u8[8192]{0}', space=vmem, size = 0x2000, scoped, tag = 'output window, operand 0']
    loop: start=0, step=1, limit=6
    $region2: #{causal_self_attention.4} parent=1 // loop_pre_header
      _
    $region3: #{causal_self_attention.4} parent=1 // loop_header
      %s13 = sphi 0, %s17
      %p14 = scmp.ge.s32.totalorder %s13, 6
      %s20 = sphi 0, %s39
      %s21 = sphi 0, %s35
      %s22 = sphi 0, %s31
      %s23 = sphi 0, %s20
      %s24 = sphi 0, %s21
      %s25 = sphi 0, %s22
      %s26 = sphi 0, %s23
      %s27 = sphi 0, %s24
      %s28 = sphi 0, %s25
      %s48 = sphi 0, %s50
      %s51 = sphi 0, %s48
      %s52 = sphi 0, %s51
      %s68 = sphi 0, %s52
      %s80 = sphi 0, %s82
      %s83 = sphi 0, %s80
      %s84 = sphi 0, %s83
      %s100 = sphi 0, %s84
      %s112 = sphi 0, %s114
      %s115 = sphi 0, %s112
      %s116 = sphi 0, %s115
      %s132 = sphi 0, %s116
      %s144 = sphi 0, %s146
      %s147 = sphi 0, %s144
      %s148 = sphi 0, %s147
      %s164 = sphi 0, %s148
    $region4: #{causal_self_attention.4} parent=1 // loop_header_branch
      %16 = sbr.rel (%p14) target = $region8
    $region5: #{causal_self_attention.4} parent=1 // loop_body
      %s18 = ssub.s32 %s13, 1
      %s19 = ssub.s32 %s13, 2
      %s29 = sadd.s32 1, %s22
      %p30 = scmp.ge.s32.totalorder %s29, 1
      %s31 = scalar_select %p30, 0, %s29
      %s32 = sadd.s32 1, %s21
      %s33 = scalar_select %p30, %s32, %s21
      %p34 = scmp.ge.s32.totalorder %s33, 2
      %s35 = scalar_select %p34, 0, %s33
      %s36 = sadd.s32 1, %s20
      %s37 = scalar_select %p34, %s36, %s20
      %p38 = scmp.ge.s32.totalorder %s37, 2
      %s39 = scalar_select %p38, 0, %s37
      %s40 = sld [smem:[#allocation7 + %s22]]
      %s41 = sld [smem:[#allocation7 + %s31]]
      %s42 = ssub.s32 %s20, %s39
      %s43 = ssub.s32 %s40, %s41
      %s44 = sor.u32 %s42, %s43
      %s45 = ssub.s32 %s21, %s35
      %s46 = sor.u32 %s44, %s45
      %p47 = scmp.eq.s32.totalorder %s46, 0
      %s49 = sadd.s32 %s48, 1
      %s50 = scalar_select %p47, %s48, %s49
      %p53 = pneg %p47
      %p54 = scmp.eq.s32.totalorder %s13, 3
      %p55 = por %p53, %p54
      %p56 = scmp.ne.s32.totalorder %s48, %s51
      %p57 = scmp.eq.s32.totalorder %s13, 0
      %p58 = por %p56, %p57
      %p59 = scmp.ne.s32.totalorder %s48, %s51
      %p60 = scmp.eq.s32.totalorder %s18, 3
      %p61 = por %p59, %p60
      %p62 = scmp.ne.s32.totalorder %s51, %s52
      %p63 = scmp.eq.s32.totalorder %s18, 0
      %p64 = por %p62, %p63
      %p65 = scmp.ne.s32.totalorder %s51, %s52
      %p66 = scmp.eq.s32.totalorder %s19, 3
      %p67 = por %p65, %p66
      %p69 = scmp.ne.s32.totalorder %s52, %s68
      %p70 = scmp.eq.s32.totalorder %s19, 0
      %p71 = por %p69, %p70
      %s72 = sld [smem:[#allocation8 + %s22]]
      %s73 = sld [smem:[#allocation8 + %s31]]
      %s74 = ssub.s32 %s20, %s39
      %s75 = ssub.s32 %s21, %s35
      %s76 = sor.u32 %s74, %s75
      %s77 = ssub.s32 %s72, %s73
      %s78 = sor.u32 %s76, %s77
      %p79 = scmp.eq.s32.totalorder %s78, 0
      %s81 = sadd.s32 %s80, 1
      %s82 = scalar_select %p79, %s80, %s81
      %p85 = pneg %p79
      %p86 = scmp.eq.s32.totalorder %s13, 3
      %p87 = por %p85, %p86
      %p88 = scmp.ne.s32.totalorder %s80, %s83
      %p89 = scmp.eq.s32.totalorder %s13, 0
      %p90 = por %p88, %p89
      %p91 = scmp.ne.s32.totalorder %s80, %s83
      %p92 = scmp.eq.s32.totalorder %s18, 3
      %p93 = por %p91, %p92
      %p94 = scmp.ne.s32.totalorder %s83, %s84
      %p95 = scmp.eq.s32.totalorder %s18, 0
      %p96 = por %p94, %p95
      %p97 = scmp.ne.s32.totalorder %s83, %s84
      %p98 = scmp.eq.s32.totalorder %s19, 3
      %p99 = por %p97, %p98
      %p101 = scmp.ne.s32.totalorder %s84, %s100
      %p102 = scmp.eq.s32.totalorder %s19, 0
      %p103 = por %p101, %p102
      %s104 = sld [smem:[#allocation8 + %s22]]
      %s105 = sld [smem:[#allocation8 + %s31]]
      %s106 = ssub.s32 %s20, %s39
      %s107 = ssub.s32 %s21, %s35
      %s108 = sor.u32 %s106, %s107
      %s109 = ssub.s32 %s104, %s105
      %s110 = sor.u32 %s108, %s109
      %p111 = scmp.eq.s32.totalorder %s110, 0
      %s113 = sadd.s32 %s112, 1
      %s114 = scalar_select %p111, %s112, %s113
      %p117 = pneg %p111
      %p118 = scmp.eq.s32.totalorder %s13, 3
      %p119 = por %p117, %p118
      %p120 = scmp.ne.s32.totalorder %s112, %s115
      %p121 = scmp.eq.s32.totalorder %s13, 0
      %p122 = por %p120, %p121
      %p123 = scmp.ne.s32.totalorder %s112, %s115
      %p124 = scmp.eq.s32.totalorder %s18, 3
      %p125 = por %p123, %p124
      %p126 = scmp.ne.s32.totalorder %s115, %s116
      %p127 = scmp.eq.s32.totalorder %s18, 0
      %p128 = por %p126, %p127
      %p129 = scmp.ne.s32.totalorder %s115, %s116
      %p130 = scmp.eq.s32.totalorder %s19, 3
      %p131 = por %p129, %p130
      %p133 = scmp.ne.s32.totalorder %s116, %s132
      %p134 = scmp.eq.s32.totalorder %s19, 0
      %p135 = por %p133, %p134
      %s136 = sld [smem:[#allocation7 + %s22]]
      %s137 = sld [smem:[#allocation7 + %s31]]
      %s138 = ssub.s32 %s20, %s39
      %s139 = ssub.s32 %s136, %s137
      %s140 = sor.u32 %s138, %s139
      %s141 = ssub.s32 %s21, %s35
      %s142 = sor.u32 %s140, %s141
      %p143 = scmp.eq.s32.totalorder %s142, 0
      %s145 = sadd.s32 %s144, 1
      %s146 = scalar_select %p143, %s144, %s145
      %p149 = pneg %p143
      %p150 = scmp.eq.s32.totalorder %s13, 3
      %p151 = por %p149, %p150
      %p152 = scmp.ne.s32.totalorder %s144, %s147
      %p153 = scmp.eq.s32.totalorder %s13, 0
      %p154 = por %p152, %p153
      %p155 = scmp.ne.s32.totalorder %s144, %s147
      %p156 = scmp.eq.s32.totalorder %s18, 3
      %p157 = por %p155, %p156
      %p158 = scmp.ne.s32.totalorder %s147, %s148
      %p159 = scmp.eq.s32.totalorder %s18, 0
      %p160 = por %p158, %p159
      %p161 = scmp.ne.s32.totalorder %s147, %s148
      %p162 = scmp.eq.s32.totalorder %s19, 3
      %p163 = por %p161, %p162
      %p165 = scmp.ne.s32.totalorder %s148, %s164
      %p166 = scmp.eq.s32.totalorder %s19, 0
      %p167 = por %p165, %p166
      %p168 = scmp.le.s32.totalorder 1, %s13
      %p169 = scmp.lt.s32.totalorder %s13, 5
      %p170 = pnand %p168, %p169
      %p171 = pneg %p170
      // Predicated region
      $region9: #{causal_self_attention.4} parent=5 // pred_check
        _
      $region10: #{causal_self_attention.4} parent=5 // pred_check_branch
        %173 = sbr.rel (%p170) target = $region12
      $region11: #{causal_self_attention.4} parent=5 // pred_region
        %s174 = ssub.s32 %s13, 1
      $region12: #{causal_self_attention.4} parent=5 // pred_fallthru
        _
      %p175 = scmp.lt.s32.totalorder %s13, 4
      // Predicated region
      $region13: #{causal_self_attention.4} parent=5 // pred_check
        %p176 = pneg %p175
      $region14: #{causal_self_attention.4} parent=5 // pred_check_branch
        %178 = sbr.rel (%p176) target = $region16
      $region15: #{causal_self_attention.4} parent=5 // pred_region
        // Predicated region
        $region17: #{causal_self_attention.4} parent=15 // pred_check
          %p179 = pneg %p58
        $region18: #{causal_self_attention.4} parent=15 // pred_check_branch
          %181 = sbr.rel (%p179) target = $region20
        $region19: #{causal_self_attention.4} parent=15 // pred_region
          %s182 = sand.u32 %s48, 1
          %s183 = sand.u32 %s48, 1
          %s184 = smul.addr %s183, 8
          %s185 = scalar_lea.vmem [#allocation9], %s184
          %s186 = sld [smem:[#allocation7 + %s22]]
          %s187 = smul.u32 8, %s186
          %s188 = smul.addr %s187, 2
          %s189 = sadd.s32 %s21, %s188
          %s190 = smul.addr %s20, 16
          %s191 = sadd.s32 %s189, %s190
          %s192 = scalar_lea.vmem %s2, %s191
          // Predicated region
          $region21: #{causal_self_attention.4} parent=19 // pred_check
            _
          $region22: #{causal_self_attention.4} parent=19 // pred_check_branch
            %194 = sbr.rel (0) target = $region24
          $region23: #{causal_self_attention.4} parent=19 // pred_region
            // Predicated region
            $region25: #{causal_self_attention.4} parent=23 // pred_check
              _
            $region26: #{causal_self_attention.4} parent=23 // pred_check_branch
              %196 = sbr.rel target = $region28
            $region27: #{causal_self_attention.4} parent=23 // pred_region
              // Predicated region
              $region40: #{causal_self_attention.4} parent=27 // pred_check
                _
              $region41: #{causal_self_attention.4} parent=27 // pred_check_branch
                %226 = sbr.rel (0) target = $region43
              $region42: #{causal_self_attention.4} parent=27 // pred_region
                loop: start=0, step=1, limit=1
                $region44: #{causal_self_attention.4} parent=42 // loop_pre_header
                  _
                $region45: #{causal_self_attention.4} parent=42 // loop_header
                  %s228 = sphi 0, %s232
                  %p229 = scmp.ge.s32.totalorder %s228, 1
                  %s233 = sphi %s192, %s192
                  %s234 = sphi %s185, %s185
                $region46: #{causal_self_attention.4} parent=42 // loop_header_branch
                  %231 = sbr.rel (%p229) target = $region50
                $region47: #{causal_self_attention.4} parent=42 // loop_body
                  _
                $region48: #{causal_self_attention.4} parent=42 // loop_footer
                  %s232 = sadd.s32 1, %s228
                $region49: #{causal_self_attention.4} parent=42 // loop_footer_branch
                  %227 = sbr.rel target = $region45
                $region50: #{causal_self_attention.4} parent=42 // loop_exit
                  _
                %s236 = ssub.s32 2, 1
                loop: start=0, step=1, limit=1
                $region51: #{causal_self_attention.4} parent=42 // loop_pre_header
                  _
                $region52: #{causal_self_attention.4} parent=42 // loop_header
                  %s238 = sphi 0, %s242
                  %p239 = scmp.ge.s32.totalorder %s238, 1
                  %s243 = sphi %s192, %s192
                  %s244 = sphi %s185, %s185
                $region53: #{causal_self_attention.4} parent=42 // loop_header_branch
                  %241 = sbr.rel (%p239) target = $region57
                $region54: #{causal_self_attention.4} parent=42 // loop_body
                  %v245 = vld [vmem:[%s243] sm:%s236]
                  %246 = vst [vmem:[%s244] sm:%s236] %v245
                  %v247 = vld [vmem:[%s243 + $0x2] sm:%s236]
                  %248 = vst [vmem:[%s244 + $0x1] sm:%s236] %v247
                  %v249 = vld [vmem:[%s243 + $0x4] sm:%s236]
                  %250 = vst [vmem:[%s244 + $0x2] sm:%s236] %v249
                  %v251 = vld [vmem:[%s243 + $0x6] sm:%s236]
                  %252 = vst [vmem:[%s244 + $0x3] sm:%s236] %v251
                  %v253 = vld [vmem:[%s243 + $0x8] sm:%s236]
                  %254 = vst [vmem:[%s244 + $0x4] sm:%s236] %v253
                  %v255 = vld [vmem:[%s243 + $0xa] sm:%s236]
                  %256 = vst [vmem:[%s244 + $0x5] sm:%s236] %v255
                  %v257 = vld [vmem:[%s243 + $0xc] sm:%s236]
                  %258 = vst [vmem:[%s244 + $0x6] sm:%s236] %v257
                  %v259 = vld [vmem:[%s243 + $0xe] sm:%s236]
                  %260 = vst [vmem:[%s244 + $0x7] sm:%s236] %v259
                $region55: #{causal_self_attention.4} parent=42 // loop_footer
                  %s242 = sadd.s32 1, %s238
                $region56: #{causal_self_attention.4} parent=42 // loop_footer_branch
                  %237 = sbr.rel target = $region52
                $region57: #{causal_self_attention.4} parent=42 // loop_exit
                  _
              $region43: #{causal_self_attention.4} parent=27 // pred_fallthru
                _
            $region28: #{causal_self_attention.4} parent=23 // pred_fallthru
              _
            // Predicated region
            $region29: #{causal_self_attention.4} parent=23 // pred_check
              _
            $region30: #{causal_self_attention.4} parent=23 // pred_check_branch
              %198 = sbr.rel (0) target = $region32
            $region31: #{causal_self_attention.4} parent=23 // pred_region
              %s200 = ssub.s32 2, 1
              loop: start=0, step=1, limit=1
              $region33: #{causal_self_attention.4} parent=31 // loop_pre_header
                _
              $region34: #{causal_self_attention.4} parent=31 // loop_header
                %s202 = sphi 0, %s206
                %p203 = scmp.ge.s32.totalorder %s202, 1
                %s207 = sphi %s192, %s192
                %s208 = sphi %s185, %s185
              $region35: #{causal_self_attention.4} parent=31 // loop_header_branch
                %205 = sbr.rel (%p203) target = $region39
              $region36: #{causal_self_attention.4} parent=31 // loop_body
                %v209 = vld [vmem:[%s207] sm:%s200]
                %210 = vst [vmem:[%s208] sm:%s200] %v209
                %v211 = vld [vmem:[%s207 + $0x2] sm:%s200]
                %212 = vst [vmem:[%s208 + $0x1] sm:%s200] %v211
                %v213 = vld [vmem:[%s207 + $0x4] sm:%s200]
                %214 = vst [vmem:[%s208 + $0x2] sm:%s200] %v213
                %v215 = vld [vmem:[%s207 + $0x6] sm:%s200]
                %216 = vst [vmem:[%s208 + $0x3] sm:%s200] %v215
                %v217 = vld [vmem:[%s207 + $0x8] sm:%s200]
                %218 = vst [vmem:[%s208 + $0x4] sm:%s200] %v217
                %v219 = vld [vmem:[%s207 + $0xa] sm:%s200]
                %220 = vst [vmem:[%s208 + $0x5] sm:%s200] %v219
                %v221 = vld [vmem:[%s207 + $0xc] sm:%s200]
                %222 = vst [vmem:[%s208 + $0x6] sm:%s200] %v221
                %v223 = vld [vmem:[%s207 + $0xe] sm:%s200]
                %224 = vst [vmem:[%s208 + $0x7] sm:%s200] %v223
              $region37: #{causal_self_attention.4} parent=31 // loop_footer
                %s206 = sadd.s32 1, %s202
              $region38: #{causal_self_attention.4} parent=31 // loop_footer_branch
                %201 = sbr.rel target = $region34
              $region39: #{causal_self_attention.4} parent=31 // loop_exit
                _
            $region32: #{causal_self_attention.4} parent=23 // pred_fallthru
              _
          $region24: #{causal_self_attention.4} parent=19 // pred_fallthru
            _
          %261 = vnop
        $region20: #{causal_self_attention.4} parent=15 // pred_fallthru
          _
        // Predicated region
        $region58: #{causal_self_attention.4} parent=15 // pred_check
          %p262 = pneg %p90
        $region59: #{causal_self_attention.4} parent=15 // pred_check_branch
          %264 = sbr.rel (%p262) target = $region61
        $region60: #{causal_self_attention.4} parent=15 // pred_region
          %s265 = sld [smem:[#allocation8 + %s22]]
          %p266 = scmp.lt.s32.totalorder %s20, 1
          %s267 = scalar_select %p266, %s20, 1
          %p268 = scmp.lt.s32.totalorder %s21, 1
          %s269 = scalar_select %p268, %s21, 1
          %p270 = scmp.lt.s32.totalorder %s265, 0
          %s271 = scalar_select %p270, %s265, 0
          %s272 = sadd.s32 %s271, %s269
          %s273 = smul.addr %s267, 2
          %s274 = sadd.s32 %s272, %s273
          %s275 = smul.addr %s274, 4
          %s276 = scalar_lea.vmem %s3, %s275
          %s277 = sld [smem:[#allocation8 + %s22]]
        $region61: #{causal_self_attention.4} parent=15 // pred_fallthru
          _
        // Predicated region
        $region62: #{causal_self_attention.4} parent=15 // pred_check
          %p278 = pneg %p122
        $region63: #{causal_self_attention.4} parent=15 // pred_check_branch
          %280 = sbr.rel (%p278) target = $region65
        $region64: #{causal_self_attention.4} parent=15 // pred_region
          %s281 = sld [smem:[#allocation8 + %s22]]
          %p282 = scmp.lt.s32.totalorder %s20, 1
          %s283 = scalar_select %p282, %s20, 1
          %p284 = scmp.lt.s32.totalorder %s21, 1
          %s285 = scalar_select %p284, %s21, 1
          %p286 = scmp.lt.s32.totalorder %s281, 0
          %s287 = scalar_select %p286, %s281, 0
          %s288 = sadd.s32 %s287, %s285
          %s289 = smul.addr %s283, 2
          %s290 = sadd.s32 %s288, %s289
          %s291 = smul.addr %s290, 4
          %s292 = scalar_lea.vmem %s4, %s291
          %s293 = sld [smem:[#allocation8 + %s22]]
        $region65: #{causal_self_attention.4} parent=15 // pred_fallthru
          _
      $region16: #{causal_self_attention.4} parent=5 // pred_fallthru
        _
      %p294 = scmp.le.s32.totalorder 1, %s13
      %p295 = scmp.lt.s32.totalorder %s13, 5
      %p296 = pnand %p294, %p295
      %p297 = pneg %p296
      // Predicated region
      $region66: #{causal_self_attention.4} parent=5 // pred_check
        _
      $region67: #{causal_self_attention.4} parent=5 // pred_check_branch
        %299 = sbr.rel (%p296) target = $region69
      $region68: #{causal_self_attention.4} parent=5 // pred_region
        %s300 = ssub.s32 %s13, 1
        %s301 = sand.u32 %s51, 1
        %s302 = sand.u32 %s51, 1
        %s303 = smul.addr %s302, 8
        %s304 = scalar_lea.vmem [#allocation9], %s303
        // Predicated region
        $region70: #{causal_self_attention.4} parent=68 // pred_check
          %p305 = pneg %p64
        $region71: #{causal_self_attention.4} parent=68 // pred_check_branch
          %307 = sbr.rel (%p305) target = $region73
        $region72: #{causal_self_attention.4} parent=68 // pred_region
          _
        $region73: #{causal_self_attention.4} parent=68 // pred_fallthru
          _
        %s308 = sand.u32 %s51, 1
        %s309 = sand.u32 %s51, 1
        %s310 = smul.addr %s309, 8
        %s311 = scalar_lea.vmem [#allocation9], %s310
        %p312 = pneg %p64
        %p313 = pneg %p61
        %s314 = sld [smem:[#allocation8 + %s25]]
        %p315 = scmp.lt.s32.totalorder %s23, 1
        %s316 = scalar_select %p315, %s23, 1
        %p317 = scmp.lt.s32.totalorder %s24, 1
        %s318 = scalar_select %p317, %s24, 1
        %p319 = scmp.lt.s32.totalorder %s314, 0
        %s320 = scalar_select %p319, %s314, 0
        %s321 = sadd.s32 %s320, %s318
        %s322 = smul.addr %s316, 2
        %s323 = sadd.s32 %s321, %s322
        %s324 = smul.addr %s323, 4
        %s325 = scalar_lea.vmem %s3, %s324
        %p326 = pneg %p96
        %p327 = pneg %p93
        %s328 = sld [smem:[#allocation8 + %s25]]
        %p329 = scmp.lt.s32.totalorder %s23, 1
        %s330 = scalar_select %p329, %s23, 1
        %p331 = scmp.lt.s32.totalorder %s24, 1
        %s332 = scalar_select %p331, %s24, 1
        %p333 = scmp.lt.s32.totalorder %s328, 0
        %s334 = scalar_select %p333, %s328, 0
        %s335 = sadd.s32 %s334, %s332
        %s336 = smul.addr %s330, 2
        %s337 = sadd.s32 %s335, %s336
        %s338 = smul.addr %s337, 4
        %s339 = scalar_lea.vmem %s4, %s338
        %p340 = pneg %p128
        %p341 = pneg %p125
        %p342 = pneg %p160
        %p343 = pneg %p157
        %s344 = sand.u32 %s147, 1
        %s345 = sand.u32 %s147, 1
        %s346 = smul.addr %s345, 8
        %s347 = scalar_lea.vmem [#allocation10], %s346
        %s348 = sld [smem:[#allocation7 + %s25]]
        %s349 = smul.u32 8, %s348
        %s350 = sld [smem:[#allocation8 + %s25]]
        %p351 = scmp.lt.s32.totalorder %s23, 1
        %s352 = scalar_select %p351, %s23, 1
        %p353 = scmp.lt.s32.totalorder %s24, 1
        %s354 = scalar_select %p353, %s24, 1
        %p355 = scmp.lt.s32.totalorder %s350, 0
        %s356 = scalar_select %p355, %s350, 0
        %s357 = sadd.s32 %s356, %s354
        %s358 = smul.addr %s352, 2
        %s359 = sadd.s32 %s357, %s358
        %s360 = smul.addr %s359, 4
        %s361 = scalar_lea.vmem %s3, %s360
        %s362 = sld [smem:[#allocation8 + %s25]]
        %s363 = sld [smem:[#allocation8 + %s25]]
        %p364 = scmp.lt.s32.totalorder %s23, 1
        %s365 = scalar_select %p364, %s23, 1
        %p366 = scmp.lt.s32.totalorder %s24, 1
        %s367 = scalar_select %p366, %s24, 1
        %p368 = scmp.lt.s32.totalorder %s363, 0
        %s369 = scalar_select %p368, %s363, 0
        %s370 = sadd.s32 %s369, %s367
        %s371 = smul.addr %s365, 2
        %s372 = sadd.s32 %s370, %s371
        %s373 = smul.addr %s372, 4
        %s374 = scalar_lea.vmem %s4, %s373
        %s375 = sld [smem:[#allocation8 + %s25]]
        %s376 = sld [smem:[#allocation7 + %s25]]
        %s377 = smul.u32 8, %s376
        %s379 = sld [smem:[#allocation7 + %s25]]
        %s380 = sld [smem:[#allocation8 + %s25]]
        %p381 = scmp.eq.s32.totalorder %s380, 0
        // Predicated region
        $region74: #{causal_self_attention.4} parent=68 // pred_check
          %p382 = pneg %p381
        $region75: #{causal_self_attention.4} parent=68 // pred_check_branch
          %384 = sbr.rel (%p382) target = $region77
        $region76: #{causal_self_attention.4} parent=68 // pred_region
          %v385 = vld [vmem:[%s304] sm:$0x1]
          %v386 = vld [vmem:[%s304 + $0x1] sm:$0x1]
          %v387 = vld [vmem:[%s304 + $0x2] sm:$0x1]
          %v388 = vld [vmem:[%s304 + $0x3] sm:$0x1]
          %v389 = vld [vmem:[%s304 + $0x4] sm:$0x1]
          %v390 = vld [vmem:[%s304 + $0x5] sm:$0x1]
          %v391 = vld [vmem:[%s304 + $0x6] sm:$0x1]
          %v392 = vld [vmem:[%s304 + $0x7] sm:$0x1]
          %v393 = vunpack.c.l.bf16 %v385
          %v394 = vunpack.c.l.bf16 %v386
          %v395 = vunpack.c.l.bf16 %v387
          %v396 = vunpack.c.l.bf16 %v388
          %v397 = vunpack.c.l.bf16 %v389
          %v398 = vunpack.c.l.bf16 %v390
          %v399 = vunpack.c.l.bf16 %v391
          %v400 = vunpack.c.l.bf16 %v392
          %v401 = vmul.f32 %v393, 0.35355338
          %v402 = vmul.f32 %v394, 0.35355338
          %v403 = vmul.f32 %v395, 0.35355338
          %v404 = vmul.f32 %v396, 0.35355338
          %v405 = vmul.f32 %v397, 0.35355338
          %v406 = vmul.f32 %v398, 0.35355338
          %v407 = vmul.f32 %v399, 0.35355338
          %v408 = vmul.f32 %v400, 0.35355338
          %v409 = vpack.c.bf16 %v401, %v401
          %v410 = vpack.c.bf16 %v402, %v402
          %v411 = vpack.c.bf16 %v403, %v403
          %v412 = vpack.c.bf16 %v404, %v404
          %v413 = vpack.c.bf16 %v405, %v405
          %v414 = vpack.c.bf16 %v406, %v406
          %v415 = vpack.c.bf16 %v407, %v407
          %v416 = vpack.c.bf16 %v408, %v408
          %v425 = vunpack.c.l.b16 %v409
          %v426 = vunpack.c.l.b16 %v410
          %v427 = vunpack.c.l.b16 %v411
          %v428 = vunpack.c.l.b16 %v412
          %v429 = vunpack.c.l.b16 %v413
          %v430 = vunpack.c.l.b16 %v414
          %v431 = vunpack.c.l.b16 %v415
          %v432 = vunpack.c.l.b16 %v416
          %v433 = vrot.slane %v426, 7
          %vm434 = vcmask 1041409
          %v435 = vsel %vm434, %v433, %v425
          %v436 = vrot.slane %v427, 6
          %vm437 = vcmask 1042434
          %v438 = vsel %vm437, %v436, %v435
          %v439 = vrot.slane %v428, 5
          %vm440 = vcmask 1043459
          %v441 = vsel %vm440, %v439, %v438
          %v442 = vrot.slane %v429, 4
          %vm443 = vcmask 1044484
          %v444 = vsel %vm443, %v442, %v441
          %v445 = vrot.slane %v430, 3
          %vm446 = vcmask 1045509
          %v447 = vsel %vm446, %v445, %v444
          %v448 = vrot.slane %v431, 2
          %vm449 = vcmask 1046534
          %v450 = vsel %vm449, %v448, %v447
          %v451 = vrot.slane %v432, 1
          %vm452 = vcmask 1047559
          %v453 = vsel %vm452, %v451, %v450
          %v454 = vpack.c.b16 %v453, %v453
          %vm456 = vcmask 60416
          %457 = vst.msk [vmem:[#allocation2] sm:$0xf] %vm456, %v454
          %v458 = vld [vmem:[%s304] sm:$0x1]
          %v459 = vld [vmem:[%s304 + $0x1] sm:$0x1]
          %v460 = vld [vmem:[%s304 + $0x2] sm:$0x1]
          %v461 = vld [vmem:[%s304 + $0x3] sm:$0x1]
          %v462 = vld [vmem:[%s304 + $0x4] sm:$0x1]
          %v463 = vld [vmem:[%s304 + $0x5] sm:$0x1]
          %v464 = vld [vmem:[%s304 + $0x6] sm:$0x1]
          %v465 = vld [vmem:[%s304 + $0x7] sm:$0x1]
          %v466 = vunpack.c.l.bf16 %v458
          %v467 = vunpack.c.l.bf16 %v459
          %v468 = vunpack.c.l.bf16 %v460
          %v469 = vunpack.c.l.bf16 %v461
          %v470 = vunpack.c.l.bf16 %v462
          %v471 = vunpack.c.l.bf16 %v463
          %v472 = vunpack.c.l.bf16 %v464
          %v473 = vunpack.c.l.bf16 %v465
          %v474 = vmul.f32 %v466, 0.35355338
          %v475 = vmul.f32 %v467, 0.35355338
          %v476 = vmul.f32 %v468, 0.35355338
          %v477 = vmul.f32 %v469, 0.35355338
          %v478 = vmul.f32 %v470, 0.35355338
          %v479 = vmul.f32 %v471, 0.35355338
          %v480 = vmul.f32 %v472, 0.35355338
          %v481 = vmul.f32 %v473, 0.35355338
          %v482 = vpack.c.bf16 %v474, %v474
          %v483 = vpack.c.bf16 %v475, %v475
          %v484 = vpack.c.bf16 %v476, %v476
          %v485 = vpack.c.bf16 %v477, %v477
          %v486 = vpack.c.bf16 %v478, %v478
          %v487 = vpack.c.bf16 %v479, %v479
          %v488 = vpack.c.bf16 %v480, %v480
          %v489 = vpack.c.bf16 %v481, %v481
          %v498 = vunpack.c.l.b16 %v482
          %v499 = vunpack.c.l.b16 %v483
          %v500 = vunpack.c.l.b16 %v484
          %v501 = vunpack.c.l.b16 %v485
          %v502 = vunpack.c.l.b16 %v486
          %v503 = vunpack.c.l.b16 %v487
          %v504 = vunpack.c.l.b16 %v488
          %v505 = vunpack.c.l.b16 %v489
          %v506 = vrot.slane %v498, 1
          %v507 = vsel %vm434, %v499, %v506
          %v508 = vrot.slane %v500, 7
          %v509 = vsel %vm437, %v508, %v507
          %v510 = vrot.slane %v501, 6
          %v511 = vsel %vm440, %v510, %v509
          %v512 = vrot.slane %v502, 5
          %v513 = vsel %vm443, %v512, %v511
          %v514 = vrot.slane %v503, 4
          %v515 = vsel %vm446, %v514, %v513
          %v516 = vrot.slane %v504, 3
          %v517 = vsel %vm449, %v516, %v515
          %v518 = vrot.slane %v505, 2
          %v519 = vsel %vm452, %v518, %v517
          %v520 = vpack.c.b16 %v519, %v519
          %s522 = scalar_lea.vmem [#allocation2], 4
          %523 = vst.msk [vmem:[%s522] sm:$0xf] %vm456, %v520
          %vm524 = vcmask 7168
          %525 = vst.msk [vmem:[#allocation3] sm:$0xff] %vm524, -1e+30
          %526 = vst.msk [vmem:[#allocation3 + $0x8] sm:$0xff] %vm524, -1e+30
          %527 = vst.msk [vmem:[#allocation4] sm:$0xff] %vm524, 0.0
          %528 = vst.msk [vmem:[#allocation4 + $0x8] sm:$0xff] %vm524, 0.0
          %vm529 = vcmask 64512
          %530 = vst.msk [vmem:[#allocation5] sm:$0xff] %vm529, 0.0
          %531 = vst.msk [vmem:[#allocation5 + $0x8] sm:$0xff] %vm529, 0.0
        $region77: #{causal_self_attention.4} parent=68 // pred_fallthru
          _
        %p532 = scmp.lt.s32.totalorder %s380, %s379
        // Predicated region
        $region78: #{causal_self_attention.4} parent=68 // pred_check
          %p533 = pneg %p532
        $region79: #{causal_self_attention.4} parent=68 // pred_check_branch
          %535 = sbr.rel (%p533) target = $region81
        $region80: #{causal_self_attention.4} parent=68 // pred_region
          %v536 = vld [vmem:[%s361] sm:$0xf]
          %v537 = vld [vmem:[%s374] sm:$0xf]
          %v538 = vld [vmem:[#allocation2] sm:$0xf]
          %vm539 = vcmask 64512
          %v541 = vsel %vm539, %v538, 0
          %v544 = vsel %vm539, %v536, 0
          %546 = vmatpush.bf16.xpose.msra.mxu0 0
          %547 = vmatpush.bf16.xpose.msra.mxu0 0
          %548 = vmatpush.bf16.xpose.msra.mxu0 0
          %549 = vmatpush.bf16.xpose.msra.mxu0 0
          %550 = vmatpush.bf16.xpose.msra.mxu0 0
          %551 = vmatpush.bf16.xpose.msra.mxu0 0
          %552 = vmatpush.bf16.xpose.msra.mxu0 0
          %553 = vmatpush.bf16.xpose.msra.mxu0 %v544
          %554 = vmatmul.bf16.gmra.mxu0 %v541
          %v555 = vpop.f32.mrf.mxu0
          %v556 = vadd.f32 0.0, %v555
          %v557 = vpop.f32.mrf.mxu0
          %558 = vdwg.mxu0
          %v559 = vld [vmem:[#allocation3] sm:$0xff]
          %v560 = vsel %vm539, %v556, -inf
          %561 = vmax.xlane.f32.xlu0 %v560
          %v562 = vpop.xlane.xlu0 %561
          %v563 = vmax.f32 %v559, %v562
          %v564 = vsub.f32 %v559, %v563
          %v565 = vmul.f32 %v564, 1.442695
          %v566 = vpow.pop %v565
          %568 = vset.pattern.permute.xlu0 0
          %569 = vperm.xlu0 %568, %v563
          %v570 = vpop.permute.xlu0 %569
          %v572 = vsub.f32 %v556, %v570
          %v573 = vmul.f32 %v572, 1.442695
          %v574 = vpow.pop %v573
          %v575 = vld [vmem:[#allocation4] sm:$0xff]
          %v576 = vmul.f32 %v566, %v575
          %v577 = vsel %vm539, %v574, 0.0
          %578 = vadd.xlane.f32.xlu0 %v577
          %v579 = vpop.xlane.xlu0 %578
          %v580 = vadd.f32 %v576, %v579
          %vm581 = vcmask 7168
          %582 = vst.msk [vmem:[#allocation4] sm:$0xff] %vm581, %v580
          %v583 = vld [vmem:[#allocation5] sm:$0xff]
          %585 = vset.pattern.permute.xlu0 0
          %586 = vperm.xlu0 %585, %v566
          %v587 = vpop.permute.xlu0 %586
          %v589 = vmul.f32 %v587, %v583
          %v590 = vpack.c.bf16 %v574, %v574
          %v592 = vsel %vm539, %v590, 0
          %vm594 = vcmask 1043456
          %v596 = vsel %vm594, %v537, 0
          %598 = vmatpush.bf16.msra.mxu0 0
          %599 = vmatpush.bf16.msra.mxu0 0
          %600 = vmatpush.bf16.msra.mxu0 0
          %601 = vmatpush.bf16.msra.mxu0 0
          %602 = vmatpush.bf16.msra.mxu0 0
          %603 = vmatpush.bf16.msra.mxu0 0
          %604 = vmatpush.bf16.msra.mxu0 0
          %605 = vmatpush.bf16.msra.mxu0 %v596
          %606 = vmatmul.bf16.gmra.mxu0 %v592
          %v607 = vpop.f32.mrf.mxu0
          %v608 = vadd.f32 0.0, %v607
          %v609 = vpop.f32.mrf.mxu0
          %610 = vdwg.mxu0
          %v611 = vadd.f32 %v589, %v608
          %612 = vst.msk [vmem:[#allocation5] sm:$0xff] %vm539, %v611
          %613 = vst.msk [vmem:[#allocation3] sm:$0xff] %vm581, %v563
          %s614 = scalar_lea.vmem [#allocation2], 4
          %v615 = vld [vmem:[%s614] sm:$0xf]
          %v617 = vsel %vm539, %v615, 0
          %619 = vmatpush.bf16.xpose.msra.mxu0 0
          %620 = vmatpush.bf16.xpose.msra.mxu0 0
          %621 = vmatpush.bf16.xpose.msra.mxu0 0
          %622 = vmatpush.bf16.xpose.msra.mxu0 0
          %623 = vmatpush.bf16.xpose.msra.mxu0 0
          %624 = vmatpush.bf16.xpose.msra.mxu0 0
          %625 = vmatpush.bf16.xpose.msra.mxu0 0
          %626 = vmatpush.bf16.xpose.msra.mxu0 %v544
          %627 = vmatmul.bf16.gmra.mxu0 %v617
          %v628 = vpop.f32.mrf.mxu0
          %v629 = vadd.f32 0.0, %v628
          %v630 = vpop.f32.mrf.mxu0
          %631 = vdwg.mxu0
          %s632 = scalar_lea.vmem [#allocation3], 8
          %v633 = vld [vmem:[%s632] sm:$0xff]
          %v634 = vsel %vm539, %v629, -inf
          %635 = vmax.xlane.f32.xlu0 %v634
          %v636 = vpop.xlane.xlu0 %635
          %v637 = vmax.f32 %v633, %v636
          %v638 = vsub.f32 %v633, %v637
          %v639 = vmul.f32 %v638, 1.442695
          %v640 = vpow.pop %v639
          %642 = vset.pattern.permute.xlu0 0
          %643 = vperm.xlu0 %642, %v637
          %v644 = vpop.permute.xlu0 %643
          %v646 = vsub.f32 %v629, %v644
          %v647 = vmul.f32 %v646, 1.442695
          %v648 = vpow.pop %v647
          %s649 = scalar_lea.vmem [#allocation4], 8
          %v650 = vld [vmem:[%s649] sm:$0xff]
          %v651 = vmul.f32 %v640, %v650
          %v652 = vsel %vm539, %v648, 0.0
          %653 = vadd.xlane.f32.xlu0 %v652
          %v654 = vpop.xlane.xlu0 %653
          %v655 = vadd.f32 %v651, %v654
          %656 = vst.msk [vmem:[%s649] sm:$0xff] %vm581, %v655
          %s657 = scalar_lea.vmem [#allocation5], 8
          %v658 = vld [vmem:[%s657] sm:$0xff]
          %660 = vset.pattern.permute.xlu0 0
          %661 = vperm.xlu0 %660, %v640
          %v662 = vpop.permute.xlu0 %661
          %v664 = vmul.f32 %v662, %v658
          %v665 = vpack.c.bf16 %v648, %v648
          %v667 = vsel %vm539, %v665, 0
          %669 = vmatpush.bf16.msra.mxu0 0
          %670 = vmatpush.bf16.msra.mxu0 0
          %671 = vmatpush.bf16.msra.mxu0 0
          %672 = vmatpush.bf16.msra.mxu0 0
          %673 = vmatpush.bf16.msra.mxu0 0
          %674 = vmatpush.bf16.msra.mxu0 0
          %675 = vmatpush.bf16.msra.mxu0 0
          %676 = vmatpush.bf16.msra.mxu0 %v596
          %677 = vmatmul.bf16.gmra.mxu0 %v667
          %v678 = vpop.f32.mrf.mxu0
          %v679 = vadd.f32 0.0, %v678
          %v680 = vpop.f32.mrf.mxu0
          %681 = vdwg.mxu0
          %v682 = vadd.f32 %v664, %v679
          %683 = vst.msk [vmem:[%s657] sm:$0xff] %vm539, %v682
          %684 = vst.msk [vmem:[%s632] sm:$0xff] %vm581, %v637
        $region81: #{causal_self_attention.4} parent=68 // pred_fallthru
          _
        %p685 = scmp.eq.s32.totalorder %s380, %s379
        // Predicated region
        $region82: #{causal_self_attention.4} parent=68 // pred_check
          %p686 = pneg %p685
        $region83: #{causal_self_attention.4} parent=68 // pred_check_branch
          %688 = sbr.rel (%p686) target = $region85
        $region84: #{causal_self_attention.4} parent=68 // pred_region
          %v689 = vlaneseq
          %v690 = vshrl.u32 %v689, 7
          %v691 = vlaneseq
          %v692 = vand.u32 %v691, 127
          %vm693 = vcmp.le.s32.totalorder %v692, %v690
          %v694 = vld [vmem:[%s361] sm:$0xf]
          %v695 = vld [vmem:[%s374] sm:$0xf]
          %v696 = vld [vmem:[#allocation2] sm:$0xf]
          %vm697 = vcmask 64512
          %v699 = vsel %vm697, %v696, 0
          %v702 = vsel %vm697, %v694, 0
          %704 = vmatpush.bf16.xpose.msra.mxu0 0
          %705 = vmatpush.bf16.xpose.msra.mxu0 0
          %706 = vmatpush.bf16.xpose.msra.mxu0 0
          %707 = vmatpush.bf16.xpose.msra.mxu0 0
          %708 = vmatpush.bf16.xpose.msra.mxu0 0
          %709 = vmatpush.bf16.xpose.msra.mxu0 0
          %710 = vmatpush.bf16.xpose.msra.mxu0 0
          %711 = vmatpush.bf16.xpose.msra.mxu0 %v702
          %712 = vmatmul.bf16.gmra.mxu0 %v699
          %v713 = vpop.f32.mrf.mxu0
          %v714 = vadd.f32 0.0, %v713
          %v715 = vpop.f32.mrf.mxu0
          %716 = vdwg.mxu0
          %v717 = vsel %vm693, %v714, -1e+30
          %v718 = vld [vmem:[#allocation3] sm:$0xff]
          %v719 = vsel %vm697, %v717, -inf
          %720 = vmax.xlane.f32.xlu0 %v719
          %v721 = vpop.xlane.xlu0 %720
          %v722 = vmax.f32 %v718, %v721
          %v723 = vsub.f32 %v718, %v722
          %v724 = vmul.f32 %v723, 1.442695
          %v725 = vpow.pop %v724
          %727 = vset.pattern.permute.xlu0 0
          %728 = vperm.xlu0 %727, %v722
          %v729 = vpop.permute.xlu0 %728
          %v731 = vsub.f32 %v717, %v729
          %v732 = vmul.f32 %v731, 1.442695
          %v733 = vpow.pop %v732
          %v734 = vld [vmem:[#allocation4] sm:$0xff]
          %v735 = vmul.f32 %v725, %v734
          %v736 = vsel %vm697, %v733, 0.0
          %737 = vadd.xlane.f32.xlu0 %v736
          %v738 = vpop.xlane.xlu0 %737
          %v739 = vadd.f32 %v735, %v738
          %vm740 = vcmask 7168
          %741 = vst.msk [vmem:[#allocation4] sm:$0xff] %vm740, %v739
          %v742 = vld [vmem:[#allocation5] sm:$0xff]
          %744 = vset.pattern.permute.xlu0 0
          %745 = vperm.xlu0 %744, %v725
          %v746 = vpop.permute.xlu0 %745
          %v748 = vmul.f32 %v746, %v742
          %v749 = vpack.c.bf16 %v733, %v733
          %v751 = vsel %vm697, %v749, 0
          %vm753 = vcmask 1043456
          %v755 = vsel %vm753, %v695, 0
          %757 = vmatpush.bf16.msra.mxu0 0
          %758 = vmatpush.bf16.msra.mxu0 0
          %759 = vmatpush.bf16.msra.mxu0 0
          %760 = vmatpush.bf16.msra.mxu0 0
          %761 = vmatpush.bf16.msra.mxu0 0
          %762 = vmatpush.bf16.msra.mxu0 0
          %763 = vmatpush.bf16.msra.mxu0 0
          %764 = vmatpush.bf16.msra.mxu0 %v755
          %765 = vmatmul.bf16.gmra.mxu0 %v751
          %v766 = vpop.f32.mrf.mxu0
          %v767 = vadd.f32 0.0, %v766
          %v768 = vpop.f32.mrf.mxu0
          %769 = vdwg.mxu0
          %v770 = vadd.f32 %v748, %v767
          %771 = vst.msk [vmem:[#allocation5] sm:$0xff] %vm697, %v770
          %772 = vst.msk [vmem:[#allocation3] sm:$0xff] %vm740, %v722
          %s773 = scalar_lea.vmem [#allocation2], 4
          %v774 = vld [vmem:[%s773] sm:$0xf]
          %v776 = vsel %vm697, %v774, 0
          %778 = vmatpush.bf16.xpose.msra.mxu0 0
          %779 = vmatpush.bf16.xpose.msra.mxu0 0
          %780 = vmatpush.bf16.xpose.msra.mxu0 0
          %781 = vmatpush.bf16.xpose.msra.mxu0 0
          %782 = vmatpush.bf16.xpose.msra.mxu0 0
          %783 = vmatpush.bf16.xpose.msra.mxu0 0
          %784 = vmatpush.bf16.xpose.msra.mxu0 0
          %785 = vmatpush.bf16.xpose.msra.mxu0 %v702
          %786 = vmatmul.bf16.gmra.mxu0 %v776
          %v787 = vpop.f32.mrf.mxu0
          %v788 = vadd.f32 0.0, %v787
          %v789 = vpop.f32.mrf.mxu0
          %790 = vdwg.mxu0
          %v791 = vsel %vm693, %v788, -1e+30
          %s792 = scalar_lea.vmem [#allocation3], 8
          %v793 = vld [vmem:[%s792] sm:$0xff]
          %v794 = vsel %vm697, %v791, -inf
          %795 = vmax.xlane.f32.xlu0 %v794
          %v796 = vpop.xlane.xlu0 %795
          %v797 = vmax.f32 %v793, %v796
          %v798 = vsub.f32 %v793, %v797
          %v799 = vmul.f32 %v798, 1.442695
          %v800 = vpow.pop %v799
          %802 = vset.pattern.permute.xlu0 0
          %803 = vperm.xlu0 %802, %v797
          %v804 = vpop.permute.xlu0 %803
          %v806 = vsub.f32 %v791, %v804
          %v807 = vmul.f32 %v806, 1.442695
          %v808 = vpow.pop %v807
          %s809 = scalar_lea.vmem [#allocation4], 8
          %v810 = vld [vmem:[%s809] sm:$0xff]
          %v811 = vmul.f32 %v800, %v810
          %v812 = vsel %vm697, %v808, 0.0
          %813 = vadd.xlane.f32.xlu0 %v812
          %v814 = vpop.xlane.xlu0 %813
          %v815 = vadd.f32 %v811, %v814
          %816 = vst.msk [vmem:[%s809] sm:$0xff] %vm740, %v815
          %s817 = scalar_lea.vmem [#allocation5], 8
          %v818 = vld [vmem:[%s817] sm:$0xff]
          %820 = vset.pattern.permute.xlu0 0
          %821 = vperm.xlu0 %820, %v800
          %v822 = vpop.permute.xlu0 %821
          %v824 = vmul.f32 %v822, %v818
          %v825 = vpack.c.bf16 %v808, %v808
          %v827 = vsel %vm697, %v825, 0
          %829 = vmatpush.bf16.msra.mxu0 0
          %830 = vmatpush.bf16.msra.mxu0 0
          %831 = vmatpush.bf16.msra.mxu0 0
          %832 = vmatpush.bf16.msra.mxu0 0
          %833 = vmatpush.bf16.msra.mxu0 0
          %834 = vmatpush.bf16.msra.mxu0 0
          %835 = vmatpush.bf16.msra.mxu0 0
          %836 = vmatpush.bf16.msra.mxu0 %v755
          %837 = vmatmul.bf16.gmra.mxu0 %v827
          %v838 = vpop.f32.mrf.mxu0
          %v839 = vadd.f32 0.0, %v838
          %v840 = vpop.f32.mrf.mxu0
          %841 = vdwg.mxu0
          %v842 = vadd.f32 %v824, %v839
          %843 = vst.msk [vmem:[%s817] sm:$0xff] %vm697, %v842
          %844 = vst.msk [vmem:[%s792] sm:$0xff] %vm740, %v797
          %v845 = vld [vmem:[#allocation4] sm:$0xff]
          %v846 = vrcp.pop %v845
          %v847 = vld [vmem:[#allocation5] sm:$0xff]
          %849 = vset.pattern.permute.xlu0 0
          %850 = vperm.xlu0 %849, %v846
          %v851 = vpop.permute.xlu0 %850
          %v853 = vmul.f32 %v847, %v851
          %v854 = vpack.c.bf16 %v853, %v853
          %v856 = vrot.slane %v854, 3
          %vm857 = vcmask 1040384
          %v860 = vsel %vm857, %v854, %v856
          %vm862 = vcmask 1041409
          %v863 = vsel %vm862, %v854, %v856
          %v865 = vrot.slane %v863, 1
          %vm866 = vcmask 1042434
          %v867 = vsel %vm866, %v854, %v856
          %v869 = vrot.slane %v867, 2
          %vm870 = vcmask 1043459
          %v871 = vsel %vm870, %v854, %v856
          %v873 = vrot.slane %v871, 3
          %v874 = vunpack.i.l.s16 %v860
          %v875 = vunpack.i.h.s16 %v860
          %v876 = vunpack.i.l.s16 %v865
          %v877 = vunpack.i.h.s16 %v865
          %v878 = vunpack.i.l.s16 %v869
          %v879 = vunpack.i.h.s16 %v869
          %v880 = vunpack.i.l.s16 %v873
          %v881 = vunpack.i.h.s16 %v873
          %v882 = vpack.i.b16 %v874, %v874
          %v883 = vpack.i.b16 %v875, %v875
          %v884 = vpack.i.b16 %v876, %v876
          %v885 = vpack.i.b16 %v877, %v877
          %v886 = vpack.i.b16 %v878, %v878
          %v887 = vpack.i.b16 %v879, %v879
          %v888 = vpack.i.b16 %v880, %v880
          %v889 = vpack.i.b16 %v881, %v881
          %vm898 = vcmask 57344
          %vm899 = vsmask.f32 256
          %vm900 = vmand %vm898, %vm899
          %v901 = vld [vmem:[%s347] sm:$0x1]
          %v902 = vsel %vm900, %v882, %v901
          %903 = vst [vmem:[%s347] sm:$0x1] %v902
          %v904 = vld [vmem:[%s347 + $0x1] sm:$0x1]
          %v905 = vsel %vm900, %v883, %v904
          %906 = vst [vmem:[%s347 + $0x1] sm:$0x1] %v905
          %v907 = vld [vmem:[%s347 + $0x2] sm:$0x1]
          %v908 = vsel %vm900, %v884, %v907
          %909 = vst [vmem:[%s347 + $0x2] sm:$0x1] %v908
          %v910 = vld [vmem:[%s347 + $0x3] sm:$0x1]
          %v911 = vsel %vm900, %v885, %v910
          %912 = vst [vmem:[%s347 + $0x3] sm:$0x1] %v911
          %v913 = vld [vmem:[%s347 + $0x4] sm:$0x1]
          %v914 = vsel %vm900, %v886, %v913
          %915 = vst [vmem:[%s347 + $0x4] sm:$0x1] %v914
          %v916 = vld [vmem:[%s347 + $0x5] sm:$0x1]
          %v917 = vsel %vm900, %v887, %v916
          %918 = vst [vmem:[%s347 + $0x5] sm:$0x1] %v917
          %v919 = vld [vmem:[%s347 + $0x6] sm:$0x1]
          %v920 = vsel %vm900, %v888, %v919
          %921 = vst [vmem:[%s347 + $0x6] sm:$0x1] %v920
          %v922 = vld [vmem:[%s347 + $0x7] sm:$0x1]
          %v923 = vsel %vm900, %v889, %v922
          %924 = vst [vmem:[%s347 + $0x7] sm:$0x1] %v923
          %v925 = vld [vmem:[%s809] sm:$0xff]
          %v926 = vrcp.pop %v925
          %v927 = vld [vmem:[%s817] sm:$0xff]
          %929 = vset.pattern.permute.xlu0 0
          %930 = vperm.xlu0 %929, %v926
          %v931 = vpop.permute.xlu0 %930
          %v933 = vmul.f32 %v927, %v931
          %v934 = vpack.c.bf16 %v933, %v933
          %v936 = vrot.slane %v934, 3
          %v939 = vsel %vm857, %v934, %v936
          %v941 = vsel %vm862, %v934, %v936
          %v943 = vrot.slane %v941, 1
          %v944 = vsel %vm866, %v934, %v936
          %v946 = vrot.slane %v944, 2
          %v947 = vsel %vm870, %v934, %v936
          %v949 = vrot.slane %v947, 3
          %v950 = vunpack.i.l.s16 %v939
          %v951 = vunpack.i.h.s16 %v939
          %v952 = vunpack.i.l.s16 %v943
          %v953 = vunpack.i.h.s16 %v943
          %v954 = vunpack.i.l.s16 %v946
          %v955 = vunpack.i.h.s16 %v946
          %v956 = vunpack.i.l.s16 %v949
          %v957 = vunpack.i.h.s16 %v949
          %v958 = vpack.i.b16 %v950, %v950
          %v959 = vpack.i.b16 %v951, %v951
          %v960 = vpack.i.b16 %v952, %v952
          %v961 = vpack.i.b16 %v953, %v953
          %v962 = vpack.i.b16 %v954, %v954
          %v963 = vpack.i.b16 %v955, %v955
          %v964 = vpack.i.b16 %v956, %v956
          %v965 = vpack.i.b16 %v957, %v957
          %vm974 = vsmask.f32 7938
          %vm975 = vmand %vm898, %vm974
          %v976 = vld [vmem:[%s347] sm:$0x1]
          %v977 = vsel %vm975, %v958, %v976
          %978 = vst [vmem:[%s347] sm:$0x1] %v977
          %v979 = vld [vmem:[%s347 + $0x1] sm:$0x1]
          %v980 = vsel %vm975, %v959, %v979
          %981 = vst [vmem:[%s347 + $0x1] sm:$0x1] %v980
          %v982 = vld [vmem:[%s347 + $0x2] sm:$0x1]
          %v983 = vsel %vm975, %v960, %v982
          %984 = vst [vmem:[%s347 + $0x2] sm:$0x1] %v983
          %v985 = vld [vmem:[%s347 + $0x3] sm:$0x1]
          %v986 = vsel %vm975, %v961, %v985
          %987 = vst [vmem:[%s347 + $0x3] sm:$0x1] %v986
          %v988 = vld [vmem:[%s347 + $0x4] sm:$0x1]
          %v989 = vsel %vm975, %v962, %v988
          %990 = vst [vmem:[%s347 + $0x4] sm:$0x1] %v989
          %v991 = vld [vmem:[%s347 + $0x5] sm:$0x1]
          %v992 = vsel %vm975, %v963, %v991
          %993 = vst [vmem:[%s347 + $0x5] sm:$0x1] %v992
          %v994 = vld [vmem:[%s347 + $0x6] sm:$0x1]
          %v995 = vsel %vm975, %v964, %v994
          %996 = vst [vmem:[%s347 + $0x6] sm:$0x1] %v995
          %v997 = vld [vmem:[%s347 + $0x7] sm:$0x1]
          %v998 = vsel %vm975, %v965, %v997
          %999 = vst [vmem:[%s347 + $0x7] sm:$0x1] %v998
        $region85: #{causal_self_attention.4} parent=68 // pred_fallthru
          _
        %s1000 = sand.u32 %s147, 1
        %s1001 = sand.u32 %s147, 1
        %s1002 = smul.addr %s1001, 8
        %s1003 = scalar_lea.vmem [#allocation10], %s1002
        // Predicated region
        $region86: #{causal_self_attention.4} parent=68 // pred_check
          %p1004 = pneg %p157
        $region87: #{causal_self_attention.4} parent=68 // pred_check_branch
          %1006 = sbr.rel (%p1004) target = $region89
        $region88: #{causal_self_attention.4} parent=68 // pred_region
          %s1007 = sld [smem:[#allocation7 + %s25]]
          %s1008 = smul.u32 8, %s1007
          %s1009 = smul.addr %s1008, 2
          %s1010 = sadd.s32 %s24, %s1009
          %s1011 = smul.addr %s23, 16
          %s1012 = sadd.s32 %s1010, %s1011
          %s1013 = scalar_lea.vmem %s5, %s1012
          // Predicated region
          $region90: #{causal_self_attention.4} parent=88 // pred_check
            _
          $region91: #{causal_self_attention.4} parent=88 // pred_check_branch
            %1015 = sbr.rel (0) target = $region93
          $region92: #{causal_self_attention.4} parent=88 // pred_region
            // Predicated region
            $region94: #{causal_self_attention.4} parent=92 // pred_check
              _
            $region95: #{causal_self_attention.4} parent=92 // pred_check_branch
              %1017 = sbr.rel target = $region97
            $region96: #{causal_self_attention.4} parent=92 // pred_region
              // Predicated region
              $region109: #{causal_self_attention.4} parent=96 // pred_check
                _
              $region110: #{causal_self_attention.4} parent=96 // pred_check_branch
                %1047 = sbr.rel (0) target = $region112
              $region111: #{causal_self_attention.4} parent=96 // pred_region
                loop: start=0, step=1, limit=1
                $region113: #{causal_self_attention.4} parent=111 // loop_pre_header
                  _
                $region114: #{causal_self_attention.4} parent=111 // loop_header
                  %s1049 = sphi 0, %s1053
                  %p1050 = scmp.ge.s32.totalorder %s1049, 1
                  %s1054 = sphi %s1003, %s1003
                  %s1055 = sphi %s1013, %s1013
                $region115: #{causal_self_attention.4} parent=111 // loop_header_branch
                  %1052 = sbr.rel (%p1050) target = $region119
                $region116: #{causal_self_attention.4} parent=111 // loop_body
                  _
                $region117: #{causal_self_attention.4} parent=111 // loop_footer
                  %s1053 = sadd.s32 1, %s1049
                $region118: #{causal_self_attention.4} parent=111 // loop_footer_branch
                  %1048 = sbr.rel target = $region114
                $region119: #{causal_self_attention.4} parent=111 // loop_exit
                  _
                %s1057 = ssub.s32 2, 1
                loop: start=0, step=1, limit=1
                $region120: #{causal_self_attention.4} parent=111 // loop_pre_header
                  _
                $region121: #{causal_self_attention.4} parent=111 // loop_header
                  %s1059 = sphi 0, %s1063
                  %p1060 = scmp.ge.s32.totalorder %s1059, 1
                  %s1064 = sphi %s1003, %s1003
                  %s1065 = sphi %s1013, %s1013
                $region122: #{causal_self_attention.4} parent=111 // loop_header_branch
                  %1062 = sbr.rel (%p1060) target = $region126
                $region123: #{causal_self_attention.4} parent=111 // loop_body
                  %v1066 = vld [vmem:[%s1064] sm:%s1057]
                  %1067 = vst [vmem:[%s1065] sm:%s1057] %v1066
                  %v1068 = vld [vmem:[%s1064 + $0x1] sm:%s1057]
                  %1069 = vst [vmem:[%s1065 + $0x2] sm:%s1057] %v1068
                  %v1070 = vld [vmem:[%s1064 + $0x2] sm:%s1057]
                  %1071 = vst [vmem:[%s1065 + $0x4] sm:%s1057] %v1070
                  %v1072 = vld [vmem:[%s1064 + $0x3] sm:%s1057]
                  %1073 = vst [vmem:[%s1065 + $0x6] sm:%s1057] %v1072
                  %v1074 = vld [vmem:[%s1064 + $0x4] sm:%s1057]
                  %1075 = vst [vmem:[%s1065 + $0x8] sm:%s1057] %v1074
                  %v1076 = vld [vmem:[%s1064 + $0x5] sm:%s1057]
                  %1077 = vst [vmem:[%s1065 + $0xa] sm:%s1057] %v1076
                  %v1078 = vld [vmem:[%s1064 + $0x6] sm:%s1057]
                  %1079 = vst [vmem:[%s1065 + $0xc] sm:%s1057] %v1078
                  %v1080 = vld [vmem:[%s1064 + $0x7] sm:%s1057]
                  %1081 = vst [vmem:[%s1065 + $0xe] sm:%s1057] %v1080
                $region124: #{causal_self_attention.4} parent=111 // loop_footer
                  %s1063 = sadd.s32 1, %s1059
                $region125: #{causal_self_attention.4} parent=111 // loop_footer_branch
                  %1058 = sbr.rel target = $region121
                $region126: #{causal_self_attention.4} parent=111 // loop_exit
                  _
              $region112: #{causal_self_attention.4} parent=96 // pred_fallthru
                _
            $region97: #{causal_self_attention.4} parent=92 // pred_fallthru
              _
            // Predicated region
            $region98: #{causal_self_attention.4} parent=92 // pred_check
              _
            $region99: #{causal_self_attention.4} parent=92 // pred_check_branch
              %1019 = sbr.rel (0) target = $region101
            $region100: #{causal_self_attention.4} parent=92 // pred_region
              %s1021 = ssub.s32 2, 1
              loop: start=0, step=1, limit=1
              $region102: #{causal_self_attention.4} parent=100 // loop_pre_header
                _
              $region103: #{causal_self_attention.4} parent=100 // loop_header
                %s1023 = sphi 0, %s1027
                %p1024 = scmp.ge.s32.totalorder %s1023, 1
                %s1028 = sphi %s1003, %s1003
                %s1029 = sphi %s1013, %s1013
              $region104: #{causal_self_attention.4} parent=100 // loop_header_branch
                %1026 = sbr.rel (%p1024) target = $region108
              $region105: #{causal_self_attention.4} parent=100 // loop_body
                %v1030 = vld [vmem:[%s1028] sm:%s1021]
                %1031 = vst [vmem:[%s1029] sm:%s1021] %v1030
                %v1032 = vld [vmem:[%s1028 + $0x1] sm:%s1021]
                %1033 = vst [vmem:[%s1029 + $0x2] sm:%s1021] %v1032
                %v1034 = vld [vmem:[%s1028 + $0x2] sm:%s1021]
                %1035 = vst [vmem:[%s1029 + $0x4] sm:%s1021] %v1034
                %v1036 = vld [vmem:[%s1028 + $0x3] sm:%s1021]
                %1037 = vst [vmem:[%s1029 + $0x6] sm:%s1021] %v1036
                %v1038 = vld [vmem:[%s1028 + $0x4] sm:%s1021]
                %1039 = vst [vmem:[%s1029 + $0x8] sm:%s1021] %v1038
                %v1040 = vld [vmem:[%s1028 + $0x5] sm:%s1021]
                %1041 = vst [vmem:[%s1029 + $0xa] sm:%s1021] %v1040
                %v1042 = vld [vmem:[%s1028 + $0x6] sm:%s1021]
                %1043 = vst [vmem:[%s1029 + $0xc] sm:%s1021] %v1042
                %v1044 = vld [vmem:[%s1028 + $0x7] sm:%s1021]
                %1045 = vst [vmem:[%s1029 + $0xe] sm:%s1021] %v1044
              $region106: #{causal_self_attention.4} parent=100 // loop_footer
                %s1027 = sadd.s32 1, %s1023
              $region107: #{causal_self_attention.4} parent=100 // loop_footer_branch
                %1022 = sbr.rel target = $region103
              $region108: #{causal_self_attention.4} parent=100 // loop_exit
                _
            $region101: #{causal_self_attention.4} parent=92 // pred_fallthru
              _
          $region93: #{causal_self_attention.4} parent=88 // pred_fallthru
            _
          %1082 = vnop
        $region89: #{causal_self_attention.4} parent=68 // pred_fallthru
          _
      $region69: #{causal_self_attention.4} parent=5 // pred_fallthru
        _
      %p1083 = scmp.le.s32.totalorder 2, %s13
      // Predicated region
      $region127: #{causal_self_attention.4} parent=5 // pred_check
        %p1084 = pneg %p1083
      $region128: #{causal_self_attention.4} parent=5 // pred_check_branch
        %1086 = sbr.rel (%p1084) target = $region130
      $region129: #{causal_self_attention.4} parent=5 // pred_region
        %s1087 = ssub.s32 %s13, 2
        // Predicated region
        $region131: #{causal_self_attention.4} parent=129 // pred_check
          %p1088 = pneg %p163
        $region132: #{causal_self_attention.4} parent=129 // pred_check_branch
          %1090 = sbr.rel (%p1088) target = $region134
        $region133: #{causal_self_attention.4} parent=129 // pred_region
          %s1091 = sand.u32 %s148, 1
          %s1092 = sand.u32 %s148, 1
          %s1093 = smul.addr %s1092, 8
          %s1094 = scalar_lea.vmem [#allocation10], %s1093
        $region134: #{causal_self_attention.4} parent=129 // pred_fallthru
          _
      $region130: #{causal_self_attention.4} parent=5 // pred_fallthru
        _
    $region6: #{causal_self_attention.4} parent=1 // loop_footer
      %s17 = sadd.s32 1, %s13
    $region7: #{causal_self_attention.4} parent=1 // loop_footer_branch
      %12 = sbr.rel target = $region3
    $region8: #{causal_self_attention.4} parent=1 // loop_exit
      _

</llo_original>
